<compile_context>
chip_gen: v7x
topology: tpu7x:2x2x1
jax: 0.10.0
libtpu: 0.0.40
codegen_flags: <defaults>
</compile_context>

<pallas_src>
import functools
import math

import numpy as np
import jax
import jax.numpy as jnp
from jax.experimental import pallas as pl
from jax.experimental.pallas import tpu as pltpu


# ----------------------------------------------------------------------------
# Pallas kernels
# ----------------------------------------------------------------------------
def typed_linear_kernel(x_ref, tid_ref, w_ref, o_ref, *, num_types, dout, act):
    """y[n] = act( [x[n] | onehot(type[n])] @ W_wide  ->  select type chunk )

    W_wide is [Din+T, T*dout]: per-type weights concatenated along the output
    dim, with the per-type bias folded in as T extra rows (selected by the
    appended one-hot columns).  One wide bf16 MXU matmul covers all types."""
    tid = tid_ref[...]                                          # [blk, 1] int32
    blk = tid.shape[0]
    oh = jax.lax.broadcasted_iota(jnp.int32, (blk, num_types), 1) == tid
    oh_f = oh.astype(jnp.float32)
    x_aug = jnp.concatenate(
        [x_ref[...].astype(jnp.bfloat16), oh.astype(jnp.bfloat16)], axis=-1)
    y = jnp.dot(x_aug, w_ref[...], preferred_element_type=jnp.float32)  # [blk, T*dout]
    sel = oh_f[:, 0:1] * y[:, :dout]
    for t in range(1, num_types):
        sel = sel + oh_f[:, t:t + 1] * y[:, t * dout:(t + 1) * dout]
    if act == "tanh":
        sel = jnp.tanh(sel)
    o_ref[...] = sel


def qkv_kernel(x_ref, tid_ref, w_ref, q_ref, k_ref, v_ref, *, num_types, d):
    """Fused per-node q|k|v typed linear (bias folded), three separate outputs."""
    tid = tid_ref[...]                                          # [blk, 1] int32
    blk = tid.shape[0]
    oh = jax.lax.broadcasted_iota(jnp.int32, (blk, num_types), 1) == tid
    oh_f = oh.astype(jnp.float32)
    x_aug = jnp.concatenate(
        [x_ref[...].astype(jnp.bfloat16), oh.astype(jnp.bfloat16)], axis=-1)
    y = jnp.dot(x_aug, w_ref[...], preferred_element_type=jnp.float32)  # [blk, T*3d]
    w3 = 3 * d
    sel = oh_f[:, 0:1] * y[:, :w3]
    for t in range(1, num_types):
        sel = sel + oh_f[:, t:t + 1] * y[:, t * w3:(t + 1) * w3]
    q_ref[...] = sel[:, :d]
    k_ref[...] = sel[:, d:2 * d]
    v_ref[...] = sel[:, 2 * d:3 * d]


def edge_kernel(q_ref, k_ref, v_ref, rid_ref, ratt_ref, rmsg_ref, pool_ref,
                msg_ref, att_ref, *, num_rel, d):
    """Per-edge relation transforms + compact per-head attention logits.

    ratt/rmsg are block-diagonal per-head transforms concatenated over
    relations along the output dim ([D, R*D], bf16), with relation_pri /
    sqrt(dk) already folded into ratt's columns.  Relation selection happens
    BEFORE the pooling matmul, so the score path is a single bf16 matmul with
    the [D, H] head-pooling matrix."""
    rid = rid_ref[...]                                          # [Eb, 1] int32
    eb = rid.shape[0]
    ohr = (jax.lax.broadcasted_iota(jnp.int32, (eb, num_rel), 1) == rid
           ).astype(jnp.float32)
    k = k_ref[...].astype(jnp.bfloat16)
    v = v_ref[...].astype(jnp.bfloat16)
    kt_all = jnp.dot(k, ratt_ref[...], preferred_element_type=jnp.float32)  # [Eb, R*d]
    vt_all = jnp.dot(v, rmsg_ref[...], preferred_element_type=jnp.float32)  # [Eb, R*d]

    kt = ohr[:, 0:1] * kt_all[:, :d]
    msg = ohr[:, 0:1] * vt_all[:, :d]
    for r in range(1, num_rel):
        kt = kt + ohr[:, r:r + 1] * kt_all[:, r * d:(r + 1) * d]
        msg = msg + ohr[:, r:r + 1] * vt_all[:, r * d:(r + 1) * d]

    qk = (q_ref[...] * kt).astype(jnp.bfloat16)                 # f32 mul, bf16 matmul
    att_ref[...] = jnp.dot(qk, pool_ref[...], preferred_element_type=jnp.float32)
    msg_ref[...] = msg


def out_kernel(aggr_ref, emb_ref, tid_ref, wa_ref, tbl_ref, o_ref,
               *, num_types, d, use_norm):
    """gelu -> typed a_linear (bias folded) -> gated skip -> typed LayerNorm."""
    a = aggr_ref[...]
    # exact (erf) gelu, matching torch.nn.functional.gelu
    a = 0.5 * a * (1.0 + jax.lax.erf(a * 0.7071067811865476))

    tid = tid_ref[...]                                          # [blk, 1] int32
    blk = tid.shape[0]
    oh = jax.lax.broadcasted_iota(jnp.int32, (blk, num_types), 1) == tid
    oh_f = oh.astype(jnp.float32)
    a_aug = jnp.concatenate(
        [a.astype(jnp.bfloat16), oh.astype(jnp.bfloat16)], axis=-1)
    y = jnp.dot(a_aug, wa_ref[...], preferred_element_type=jnp.float32)  # [blk, T*d]
    x = oh_f[:, 0:1] * y[:, :d]
    for t in range(1, num_types):
        x = x + oh_f[:, t:t + 1] * y[:, t * d:(t + 1) * d]

    # one matmul fetches skip | gamma | beta (table is [T, 1+2d])
    sel = jnp.dot(oh_f, tbl_ref[...], preferred_element_type=jnp.float32)
    alpha = sel[:, 0:1]
    h = x * alpha + emb_ref[...] * (1.0 - alpha)

    if use_norm:
        g = sel[:, 1:1 + d]
        b = sel[:, 1 + d:1 + 2 * d]
        mean = jnp.mean(h, axis=-1, keepdims=True)
        var = jnp.mean((h - mean) ** 2, axis=-1, keepdims=True)
        h = (h - mean) * jax.lax.rsqrt(var + 1e-5) * g + b
    o_ref[...] = h


# ----------------------------------------------------------------------------
# Pallas wrappers
# ----------------------------------------------------------------------------
_COMPILER_PARAMS = pltpu.CompilerParams(
    dimension_semantics=("parallel",),          # shard row blocks across TCs
    vmem_limit_bytes=48 * 1024 * 1024,          # headroom under v7x 64 MiB
)


def _full_spec(shape):
    nd = len(shape)
    return pl.BlockSpec(shape, lambda i, _nd=nd: (0,) * _nd)


def typed_linear(x, tid, w_wide, *, num_types, dout, act, blk):
    Np, Din = x.shape
    kern = functools.partial(typed_linear_kernel, num_types=num_types,
                             dout=dout, act=act)
    return pl.pallas_call(
        kern,
        out_shape=jax.ShapeDtypeStruct((Np, dout), jnp.float32),
        grid=(Np // blk,),
        in_specs=[pl.BlockSpec((blk, Din), lambda i: (i, 0)),
                  pl.BlockSpec((blk, 1), lambda i: (i, 0)),
                  _full_spec(w_wide.shape)],
        out_specs=pl.BlockSpec((blk, dout), lambda i: (i, 0)),
        compiler_params=_COMPILER_PARAMS,
    )(x, tid, w_wide)


def qkv_linear(x, tid, w_wide, *, num_types, d, blk):
    Np, Din = x.shape
    kern = functools.partial(qkv_kernel, num_types=num_types, d=d)
    out_spec = pl.BlockSpec((blk, d), lambda i: (i, 0))
    return pl.pallas_call(
        kern,
        out_shape=(jax.ShapeDtypeStruct((Np, d), jnp.float32),) * 3,
        grid=(Np // blk,),
        in_specs=[pl.BlockSpec((blk, Din), lambda i: (i, 0)),
                  pl.BlockSpec((blk, 1), lambda i: (i, 0)),
                  _full_spec(w_wide.shape)],
        out_specs=(out_spec, out_spec, out_spec),
        compiler_params=_COMPILER_PARAMS,
    )(x, tid, w_wide)


def edge_attention(q_e, k_e, v_e, rid, ratt_cat, rmsg_cat, pool, *, num_rel, eb):
    Ep, D = q_e.shape
    H = pool.shape[1]
    kern = functools.partial(edge_kernel, num_rel=num_rel, d=D)
    edge_spec = pl.BlockSpec((eb, D), lambda i: (i, 0))
    msg, att = pl.pallas_call(
        kern,
        out_shape=(jax.ShapeDtypeStruct((Ep, D), jnp.float32),
                   jax.ShapeDtypeStruct((Ep, H), jnp.float32)),
        grid=(Ep // eb,),
        in_specs=[edge_spec, edge_spec, edge_spec,
                  pl.BlockSpec((eb, 1), lambda i: (i, 0)),
                  _full_spec(ratt_cat.shape),
                  _full_spec(rmsg_cat.shape),
                  _full_spec(pool.shape)],
        out_specs=(edge_spec, pl.BlockSpec((eb, H), lambda i: (i, 0))),
        compiler_params=_COMPILER_PARAMS,
    )(q_e, k_e, v_e, rid, ratt_cat, rmsg_cat, pool)
    return msg, att


def output_block(aggr, emb, tid, wa_wide, tbl, *, num_types, use_norm, blk):
    Np, D = aggr.shape
    kern = functools.partial(out_kernel, num_types=num_types, d=D, use_norm=use_norm)
    return pl.pallas_call(
        kern,
        out_shape=jax.ShapeDtypeStruct((Np, D), jnp.float32),
        grid=(Np // blk,),
        in_specs=[pl.BlockSpec((blk, D), lambda i: (i, 0)),
                  pl.BlockSpec((blk, D), lambda i: (i, 0)),
                  pl.BlockSpec((blk, 1), lambda i: (i, 0)),
                  _full_spec(wa_wide.shape),
                  _full_spec(tbl.shape)],
        out_specs=pl.BlockSpec((blk, D), lambda i: (i, 0)),
        compiler_params=_COMPILER_PARAMS,
    )(aggr, emb, tid, wa_wide, tbl)


# ----------------------------------------------------------------------------
# Parameter init (fused / pre-folded layouts)
# ----------------------------------------------------------------------------
def sinusoid_table(n_hid, max_len):
    position = np.arange(max_len, dtype=np.float32)[:, None]
    div_term = np.exp(np.arange(0, n_hid, 2, dtype=np.float32)
                      * -(math.log(10000.0) / n_hid))
    emb = np.zeros((max_len, n_hid), np.float32)
    emb[:, 0::2] = np.sin(position * div_term) / math.sqrt(n_hid)
    emb[:, 1::2] = np.cos(position * div_term) / math.sqrt(n_hid)
    return jnp.asarray(emb)


def block_diag_stack(rel):
    """[R, H, dk, dk] -> [R, H*dk, H*dk] block-diagonal per relation."""
    R, H, dk, _ = rel.shape
    out = jnp.zeros((R, H * dk, H * dk), jnp.float32)
    for h in range(H):
        out = out.at[:, h * dk:(h + 1) * dk, h * dk:(h + 1) * dk].set(rel[:, h])
    return out


def typed_wide(w_stack, b_stack):
    """[T, din, dout], [T, dout] -> [din+T, T*dout] with bias folded into rows."""
    T, din, dout = w_stack.shape
    top = jnp.concatenate([w_stack[t] for t in range(T)], axis=1)   # [din, T*dout]
    bias = jnp.zeros((T, T * dout), jnp.float32)
    for t in range(T):
        bias = bias.at[t, t * dout:(t + 1) * dout].set(b_stack[t])
    return jnp.concatenate([top, bias], axis=0)


def init_params(key, n_feats, n_hid, num_types, num_relations, n_heads, n_layers):
    D, T, R, H = n_hid, num_types, num_relations, n_heads
    dk = D // H
    keys = iter(jax.random.split(key, 256))

    def nrm(shape, scale=0.1):
        return scale * jax.random.normal(next(keys), shape, dtype=jnp.float32)

    sin_tab = sinusoid_table(D, 3)                                  # [3, D]
    head_of = np.repeat(np.arange(H), dk)                           # [D]
    pool = (head_of[:, None] == np.arange(H)[None, :]).astype(np.float32)  # [D, H]

    adapt_w, adapt_b = nrm((T, n_feats, D)), nrm((T, D))
    params = {
        "adapt_w": typed_wide(adapt_w, adapt_b).astype(jnp.bfloat16),   # [F+T, T*D]
        "pool": jnp.asarray(pool).astype(jnp.bfloat16),                 # [D, H]
        "layers": [],
        "use_norm": [],
    }

    glorot = math.sqrt(6.0 / (dk + dk))
    for l in range(n_layers):
        q_w, q_b = nrm((T, D, D)), nrm((T, D))
        k_w, k_b = nrm((T, D, D)), nrm((T, D))
        v_w, v_b = nrm((T, D, D)), nrm((T, D))
        a_w, a_b = nrm((T, D, D)), nrm((T, D))
        ratt = jax.random.uniform(next(keys), (R, H, dk, dk), jnp.float32, -glorot, glorot)
        rmsg = jax.random.uniform(next(keys), (R, H, dk, dk), jnp.float32, -glorot, glorot)
        rel_pri = jnp.ones((R, H), jnp.float32)
        te_w, te_b = nrm((D, D)), nrm((D,))
        se_w, se_b = nrm((D, D)), nrm((D,))

        # fused q|k|v per type, bias rows folded in -> [D+T, T*3D]
        qkv_wt = jnp.stack([jnp.concatenate([q_w[t], k_w[t], v_w[t]], axis=1)
                            for t in range(T)])                    # [T, D, 3D]
        qkv_bt = jnp.concatenate([q_b, k_b, v_b], axis=1)           # [T, 3D]
        qkv_wide = typed_wide(qkv_wt, qkv_bt).astype(jnp.bfloat16)

        a_wide = typed_wide(a_w, a_b).astype(jnp.bfloat16)          # [D+T, T*D]

        # fold relation_pri / sqrt(dk) into the attention transform columns
        scale = rel_pri / math.sqrt(dk)                             # [R, H]
        ratt_bd = block_diag_stack(ratt * scale[:, :, None, None])  # [R, D, D]
        rmsg_bd = block_diag_stack(rmsg)
        ratt_cat = jnp.concatenate([ratt_bd[r] for r in range(R)], axis=1)  # [D, R*D]
        rmsg_cat = jnp.concatenate([rmsg_bd[r] for r in range(R)], axis=1)

        # temporal/spatial contribution tables: lin(sin_emb(v)) @ Wk/Wv[t] -> [3, T, D]
        te_table = sin_tab @ te_w + te_b
        se_table = sin_tab @ se_w + se_b
        te_k = jnp.einsum("vd,tde->vte", te_table, k_w)
        se_k = jnp.einsum("vd,tde->vte", se_table, k_w)
        te_v = jnp.einsum("vd,tde->vte", te_table, v_w)
        se_v = jnp.einsum("vd,tde->vte", se_table, v_w)

        # skip | gamma | beta fused into one [T, 1+2D] table (single oh@table matmul)
        tbl = jnp.concatenate([jax.nn.sigmoid(jnp.ones((T, 1), jnp.float32)),
                               jnp.ones((T, D), jnp.float32),
                               jnp.zeros((T, D), jnp.float32)], axis=1)

        params["layers"].append({
            "qkv_w": qkv_wide, "a_w": a_wide,
            "ratt_cat": ratt_cat.astype(jnp.bfloat16),
            "rmsg_cat": rmsg_cat.astype(jnp.bfloat16),
            "te_k": te_k, "se_k": se_k, "te_v": te_v, "se_v": se_v,
            "tbl": tbl,
        })
        params["use_norm"].append(l < n_layers - 1)   # last layer: use_norm=False
    return params


# ----------------------------------------------------------------------------
# Forward (glue)
# ----------------------------------------------------------------------------
def layer_forward(lp, pool, node_emb, node_type_p, tid, dst, src, tval, sval,
                  rid, edge_valid, *, num_types, num_relations, use_norm, blk, eb):
    Np, D = node_emb.shape
    Ep = dst.shape[0]
    H = pool.shape[1]
    dk = D // H

    # per-node fused q|k|v typed linear (Pallas, 3 separate outputs)
    q_n, k_n, v_n = qkv_linear(node_emb, tid, lp["qkv_w"],
                               num_types=num_types, d=D, blk=blk)

    # glue: edge gathers + temporal/spatial table adds (data-dependent indexing)
    src_type = node_type_p[src]
    q_e = q_n[dst]
    k_e = k_n[src] + lp["te_k"][tval, src_type] + lp["se_k"][sval, src_type]
    v_e = v_n[src] + lp["te_v"][tval, src_type] + lp["se_v"][sval, src_type]

    # per-edge relation transforms + compact [E, H] attention logits (Pallas)
    msg, att_logits = edge_attention(q_e, k_e, v_e, rid,
                                     lp["ratt_cat"], lp["rmsg_cat"], pool,
                                     num_rel=num_relations, eb=eb)

    # glue: segment softmax over destination node, per head ([E, H] only)
    valid_f = edge_valid.astype(jnp.float32)[:, None]
    logits = jnp.where(edge_valid[:, None], att_logits, -1e30)
    seg_max = jax.ops.segment_max(logits, dst, num_segments=Np)
    ex = jnp.exp(logits - seg_max[dst]) * valid_f
    seg_sum = jax.ops.segment_sum(ex, dst, num_segments=Np)
    att = ex / (seg_sum[dst] + 1e-16)                               # [Ep, H]

    weighted = (msg.reshape(Ep, H, dk) * att[:, :, None]).reshape(Ep, D)
    aggr = jax.ops.segment_sum(weighted, dst, num_segments=Np)      # [Np, D]

    # gelu + typed output linear + gated skip + typed LayerNorm (Pallas)
    return output_block(aggr, node_emb, tid, lp["a_w"], lp["tbl"],
                        num_types=num_types, use_norm=use_norm, blk=blk)


def model_forward(params, node_feature, node_type, edge_index, edge_val, edge_type,
                  *, num_types, num_relations, blk=512, eb=512):
    N = node_feature.shape[0]
    E = edge_index.shape[0]
    D = params["pool"].shape[0]

    # pad nodes / edges to a block multiple ONCE; everything stays padded
    # through all layers and is sliced back to N only at the very end.
    Np = ((N + blk - 1) // blk) * blk
    Ep = ((E + eb - 1) // eb) * eb

    nf = jnp.pad(node_feature, ((0, Np - N), (0, 0)))
    node_type_p = jnp.pad(node_type, (0, Np - N)).astype(jnp.int32)
    tid = node_type_p[:, None]                                      # [Np, 1]

    dst = jnp.pad(edge_index[:, 0], (0, Ep - E)).astype(jnp.int32)
    src = jnp.pad(edge_index[:, 1], (0, Ep - E)).astype(jnp.int32)
    tval = jnp.pad(edge_val[:, 0], (0, Ep - E)).astype(jnp.int32)
    sval = jnp.pad(edge_val[:, 1], (0, Ep - E)).astype(jnp.int32)
    # padded edges get an out-of-range relation id -> all-zero relation mask
    rid = jnp.pad(edge_type, (0, Ep - E),
                  constant_values=num_relations).astype(jnp.int32)[:, None]
    edge_valid = jnp.arange(Ep) < E                                 # [Ep] bool

    # per-type feature adaptation + tanh (Pallas)
    res = typed_linear(nf, tid, params["adapt_w"],
                       num_types=num_types, dout=D, act="tanh", blk=blk)

    for lp, use_norm in zip(params["layers"], params["use_norm"]):
        res = layer_forward(lp, params["pool"], res, node_type_p, tid, dst, src,
                            tval, sval, rid, edge_valid,
                            num_types=num_types, num_relations=num_relations,
                            use_norm=use_norm, blk=blk, eb=eb)
    return res[:N]


# ----------------------------------------------------------------------------
if __name__ == "__main__":
    N_NODES, E_EDGES = 16, 32
    N_FEATS, N_HID = 8, 32
    NUM_TYPES, NUM_RELS, N_HEADS, N_LAYERS = 2, 2, 4, 2

    key = jax.random.PRNGKey(0)
    k0, k1, k2, k3, k4, k5 = jax.random.split(key, 6)

    node_feature = jax.random.normal(k0, (N_NODES, N_FEATS), jnp.float32)
    node_type = jax.random.randint(k1, (N_NODES,), 0, NUM_TYPES)
    edge_index = jax.random.randint(k2, (E_EDGES, 2), 0, N_NODES)   # [:,0]=dst [:,1]=src
    edge_val = jax.random.randint(k3, (E_EDGES, 2), 0, 3)           # max_len=3 encodings
    edge_type = jax.random.randint(k4, (E_EDGES,), 0, NUM_RELS)

    params = init_params(k5, N_FEATS, N_HID, NUM_TYPES, NUM_RELS, N_HEADS, N_LAYERS)

    out = model_forward(params, node_feature, node_type, edge_index, edge_val,
                        edge_type, num_types=NUM_TYPES, num_relations=NUM_RELS)
    out = jax.block_until_ready(out)
    assert out.shape == (N_NODES, N_HID)
    print("KERNEL_OK")
</pallas_src>

<mosaic_0001>
module attributes {stable_mosaic.version = 11 : i64} {
  func.func @typed_linear_kernel(%arg0: i32, %arg1: memref<512x8xf32, #tpu.memory_space<vmem>>, %arg2: memref<512x1xi32, #tpu.memory_space<vmem>>, %arg3: memref<10x64xbf16, #tpu.memory_space<vmem>>, %arg4: memref<512x32xf32, #tpu.memory_space<vmem>>) attributes {dimension_semantics = [#tpu.dimension_semantics<parallel>], iteration_bounds = array<i64: 1>, scalar_prefetch = 0 : i64, scratch_operands = 0 : i64, tpu.core_type = #tpu.core_type<tc>, window_params = [{transform_indices = @transform_0, window_bounds = array<i64: 512, 8>}, {transform_indices = @transform_1, window_bounds = array<i64: 512, 1>}, {pipeline_mode = #tpu.pipeline_mode<synchronous>, transform_indices = @transform_2, window_bounds = array<i64: 10, 64>}, {transform_indices = @transform_3, window_bounds = array<i64: 512, 32>}]} {
    %c0 = arith.constant 0 : index
    %c0_0 = arith.constant 0 : index
    %0 = vector.load %arg2[%c0, %c0_0] : memref<512x1xi32, #tpu.memory_space<vmem>>, vector<512x1xi32>
    %1 = tpu.iota {dimensions = array<i32: 1>} : vector<512x2xi32>
    %2 = vector.broadcast %0 : vector<512x1xi32> to vector<512x2xi32>
    %3 = arith.cmpi eq, %1, %2 : vector<512x2xi32>
    %4 = arith.extui %3 : vector<512x2xi1> to vector<512x2xi32>
    %5 = arith.sitofp %4 : vector<512x2xi32> to vector<512x2xf32>
    %c0_1 = arith.constant 0 : index
    %c0_2 = arith.constant 0 : index
    %6 = vector.load %arg1[%c0_1, %c0_2] : memref<512x8xf32, #tpu.memory_space<vmem>>, vector<512x8xf32>
    %7 = arith.truncf %6 : vector<512x8xf32> to vector<512x8xbf16>
    %8 = arith.extui %3 : vector<512x2xi1> to vector<512x2xi32>
    %9 = arith.sitofp %8 : vector<512x2xi32> to vector<512x2xf32>
    %10 = arith.truncf %9 : vector<512x2xf32> to vector<512x2xbf16>
    %11 = tpu.concatenate %7, %10 in 1 : vector<512x8xbf16>, vector<512x2xbf16> -> vector<512x10xbf16>
    %c0_3 = arith.constant 0 : index
    %c0_4 = arith.constant 0 : index
    %12 = vector.load %arg3[%c0_3, %c0_4] : memref<10x64xbf16, #tpu.memory_space<vmem>>, vector<10x64xbf16>
    %cst = arith.constant dense<0.000000e+00> : vector<512x64xf32>
    %13 = tpu.matmul %11, %12, %cst {dimension_numbers = #tpu.dot_dimension_numbers<[1], [0], [0], [1], [0, 0, 1, 1], [], []>} : vector<512x10xbf16>, vector<10x64xbf16>, vector<512x64xf32> -> vector<512x64xf32>
    %14 = vector.extract_strided_slice %5 {offsets = [0, 0], sizes = [512, 1], strides = [1, 1]} : vector<512x2xf32> to vector<512x1xf32>
    %15 = vector.extract_strided_slice %13 {offsets = [0, 0], sizes = [512, 32], strides = [1, 1]} : vector<512x64xf32> to vector<512x32xf32>
    %16 = vector.broadcast %14 : vector<512x1xf32> to vector<512x32xf32>
    %17 = arith.mulf %16, %15 : vector<512x32xf32>
    %18 = vector.extract_strided_slice %5 {offsets = [0, 1], sizes = [512, 1], strides = [1, 1]} : vector<512x2xf32> to vector<512x1xf32>
    %19 = vector.extract_strided_slice %13 {offsets = [0, 32], sizes = [512, 32], strides = [1, 1]} : vector<512x64xf32> to vector<512x32xf32>
    %20 = vector.broadcast %18 : vector<512x1xf32> to vector<512x32xf32>
    %21 = arith.mulf %20, %19 : vector<512x32xf32>
    %22 = arith.addf %17, %21 : vector<512x32xf32>
    %23 = math.tanh %22 : vector<512x32xf32>
    %c0_5 = arith.constant 0 : index
    %c0_6 = arith.constant 0 : index
    %24 = vector.load %arg4[%c0_5, %c0_6] : memref<512x32xf32, #tpu.memory_space<vmem>>, vector<512x32xf32>
    tpu.vector_store %arg4[%c0_5, %c0_6], %23 {strides = array<i32>} : memref<512x32xf32, #tpu.memory_space<vmem>>, vector<512x32xf32>,
    return
  }
  func.func @transform_0(%arg0: i32) -> (i32, i32) {
    %c0_i32 = arith.constant 0 : i32
    %c0_i32_0 = arith.constant 0 : i32
    return %arg0, %c0_i32 : i32, i32
  }
  func.func @transform_1(%arg0: i32) -> (i32, i32) {
    %c0_i32 = arith.constant 0 : i32
    %c0_i32_0 = arith.constant 0 : i32
    return %arg0, %c0_i32 : i32, i32
  }
  func.func @transform_2(%arg0: i32) -> (i32, i32) {
    %c0_i32 = arith.constant 0 : i32
    %c0_i32_0 = arith.constant 0 : i32
    %c0_i32_1 = arith.constant 0 : i32
    return %c0_i32, %c0_i32_0 : i32, i32
  }
  func.func @transform_3(%arg0: i32) -> (i32, i32) {
    %c0_i32 = arith.constant 0 : i32
    %c0_i32_0 = arith.constant 0 : i32
    return %arg0, %c0_i32 : i32, i32
  }
}

</mosaic_0001>

<llo_original>
// kernel: tpu_custom_call.1
$region0: #{tpu_custom_call.1}
  #allocation0 [shape = 'u32[]', space=smem, size = 0x4, offset = 0x4, fixed_abs, tag = 'smem constant byte address 0x4 - core index']
  #allocation1 [shape = 'u32[144,128]{1,0:T(1,128)}', space=vmem, size = 0x12000, scoped, tag = 'internal scratch']
  %s0 = inlined_call_operand.vmem [shape: f32[512,8], index: 0, kind: input, shape index: {}]
  %s1 = inlined_call_operand.vmem [shape: s32[512,1], index: 1, kind: input, shape index: {}]
  %s2 = inlined_call_operand.vmem [shape: bf16[10,64], index: 2, kind: input, shape index: {}]
  %s3 = inlined_call_operand.vmem [shape: f32[512,32], index: 3, kind: output, shape index: {}]
  %s4 = sld [smem:[#allocation0]]
  $region22: #{tpu_custom_call.1} parent=0
    _
  %s6 = ssub.s32 1, %s4
  %s7 = scalar_select 0, %s6, %s4
  // Predicated region
  $region2: #{tpu_custom_call.1} parent=0 // pred_check
    _
  $region3: #{tpu_custom_call.1} parent=0 // pred_check_branch
    %9 = sbr.rel (0) target = $region5
  $region4: #{tpu_custom_call.1} parent=0 // pred_region
    _
  $region5: #{tpu_custom_call.1} parent=0 // pred_fallthru
    _
  // Predicated region
  $region6: #{tpu_custom_call.1} parent=0 // pred_check
    _
  $region7: #{tpu_custom_call.1} parent=0 // pred_check_branch
    %11 = sbr.rel (0) target = $region9
  $region8: #{tpu_custom_call.1} parent=0 // pred_region
    _
  $region9: #{tpu_custom_call.1} parent=0 // pred_fallthru
    _
  // Predicated region
  $region10: #{tpu_custom_call.1} parent=0 // pred_check
    _
  $region11: #{tpu_custom_call.1} parent=0 // pred_check_branch
    %13 = sbr.rel (0) target = $region13
  $region12: #{tpu_custom_call.1} parent=0 // pred_region
    _
  $region13: #{tpu_custom_call.1} parent=0 // pred_fallthru
    _
  %v15 = vld [vmem:[%s1] sm:$0xff]
  %v16 = vld [vmem:[%s1 + $0x8] sm:$0xff]
  %v17 = vld [vmem:[%s1 + $0x10] sm:$0xff]
  %v18 = vld [vmem:[%s1 + $0x18] sm:$0xff]
  %v19 = vld [vmem:[%s1 + $0x20] sm:$0xff]
  %v20 = vld [vmem:[%s1 + $0x28] sm:$0xff]
  %v21 = vld [vmem:[%s1 + $0x30] sm:$0xff]
  %v22 = vld [vmem:[%s1 + $0x38] sm:$0xff]
  %v23 = vld [vmem:[%s1 + $0x40] sm:$0xff]
  %v24 = vld [vmem:[%s1 + $0x48] sm:$0xff]
  %v25 = vld [vmem:[%s1 + $0x50] sm:$0xff]
  %v26 = vld [vmem:[%s1 + $0x58] sm:$0xff]
  %v27 = vld [vmem:[%s1 + $0x60] sm:$0xff]
  %v28 = vld [vmem:[%s1 + $0x68] sm:$0xff]
  %v29 = vld [vmem:[%s1 + $0x70] sm:$0xff]
  %v30 = vld [vmem:[%s1 + $0x78] sm:$0xff]
  %v31 = vld [vmem:[%s1 + $0x80] sm:$0xff]
  %v32 = vld [vmem:[%s1 + $0x88] sm:$0xff]
  %v33 = vld [vmem:[%s1 + $0x90] sm:$0xff]
  %v34 = vld [vmem:[%s1 + $0x98] sm:$0xff]
  %v35 = vld [vmem:[%s1 + $0xa0] sm:$0xff]
  %v36 = vld [vmem:[%s1 + $0xa8] sm:$0xff]
  %v37 = vld [vmem:[%s1 + $0xb0] sm:$0xff]
  %v38 = vld [vmem:[%s1 + $0xb8] sm:$0xff]
  %v39 = vld [vmem:[%s1 + $0xc0] sm:$0xff]
  %v40 = vld [vmem:[%s1 + $0xc8] sm:$0xff]
  %v41 = vld [vmem:[%s1 + $0xd0] sm:$0xff]
  %v42 = vld [vmem:[%s1 + $0xd8] sm:$0xff]
  %v43 = vld [vmem:[%s1 + $0xe0] sm:$0xff]
  %v44 = vld [vmem:[%s1 + $0xe8] sm:$0xff]
  %v45 = vld [vmem:[%s1 + $0xf0] sm:$0xff]
  %v46 = vld [vmem:[%s1 + $0xf8] sm:$0xff]
  %v47 = vld [vmem:[%s1 + $0x100] sm:$0xff]
  %v48 = vld [vmem:[%s1 + $0x108] sm:$0xff]
  %v49 = vld [vmem:[%s1 + $0x110] sm:$0xff]
  %v50 = vld [vmem:[%s1 + $0x118] sm:$0xff]
  %v51 = vld [vmem:[%s1 + $0x120] sm:$0xff]
  %v52 = vld [vmem:[%s1 + $0x128] sm:$0xff]
  %v53 = vld [vmem:[%s1 + $0x130] sm:$0xff]
  %v54 = vld [vmem:[%s1 + $0x138] sm:$0xff]
  %v55 = vld [vmem:[%s1 + $0x140] sm:$0xff]
  %v56 = vld [vmem:[%s1 + $0x148] sm:$0xff]
  %v57 = vld [vmem:[%s1 + $0x150] sm:$0xff]
  %v58 = vld [vmem:[%s1 + $0x158] sm:$0xff]
  %v59 = vld [vmem:[%s1 + $0x160] sm:$0xff]
  %v60 = vld [vmem:[%s1 + $0x168] sm:$0xff]
  %v61 = vld [vmem:[%s1 + $0x170] sm:$0xff]
  %v62 = vld [vmem:[%s1 + $0x178] sm:$0xff]
  %v63 = vld [vmem:[%s1 + $0x180] sm:$0xff]
  %v64 = vld [vmem:[%s1 + $0x188] sm:$0xff]
  %v65 = vld [vmem:[%s1 + $0x190] sm:$0xff]
  %v66 = vld [vmem:[%s1 + $0x198] sm:$0xff]
  %v67 = vld [vmem:[%s1 + $0x1a0] sm:$0xff]
  %v68 = vld [vmem:[%s1 + $0x1a8] sm:$0xff]
  %v69 = vld [vmem:[%s1 + $0x1b0] sm:$0xff]
  %v70 = vld [vmem:[%s1 + $0x1b8] sm:$0xff]
  %v71 = vld [vmem:[%s1 + $0x1c0] sm:$0xff]
  %v72 = vld [vmem:[%s1 + $0x1c8] sm:$0xff]
  %v73 = vld [vmem:[%s1 + $0x1d0] sm:$0xff]
  %v74 = vld [vmem:[%s1 + $0x1d8] sm:$0xff]
  %v75 = vld [vmem:[%s1 + $0x1e0] sm:$0xff]
  %v76 = vld [vmem:[%s1 + $0x1e8] sm:$0xff]
  %v77 = vld [vmem:[%s1 + $0x1f0] sm:$0xff]
  %v78 = vld [vmem:[%s1 + $0x1f8] sm:$0xff]
  %v79 = vlaneseq
  %v80 = vand.u32 %v79, 127
  %81 = vset.pattern.permute.xlu0 0
  %82 = vperm.xlu0 %81, %v15
  %v83 = vpop.permute.xlu0 %82
  %84 = vset.pattern.permute.xlu0 0
  %85 = vperm.xlu0 %84, %v16
  %v86 = vpop.permute.xlu0 %85
  %87 = vset.pattern.permute.xlu0 0
  %88 = vperm.xlu0 %87, %v17
  %v89 = vpop.permute.xlu0 %88
  %90 = vset.pattern.permute.xlu0 0
  %91 = vperm.xlu0 %90, %v18
  %v92 = vpop.permute.xlu0 %91
  %93 = vset.pattern.permute.xlu0 0
  %94 = vperm.xlu0 %93, %v19
  %v95 = vpop.permute.xlu0 %94
  %96 = vset.pattern.permute.xlu0 0
  %97 = vperm.xlu0 %96, %v20
  %v98 = vpop.permute.xlu0 %97
  %99 = vset.pattern.permute.xlu0 0
  %100 = vperm.xlu0 %99, %v21
  %v101 = vpop.permute.xlu0 %100
  %102 = vset.pattern.permute.xlu0 0
  %103 = vperm.xlu0 %102, %v22
  %v104 = vpop.permute.xlu0 %103
  %105 = vset.pattern.permute.xlu0 0
  %106 = vperm.xlu0 %105, %v23
  %v107 = vpop.permute.xlu0 %106
  %108 = vset.pattern.permute.xlu0 0
  %109 = vperm.xlu0 %108, %v24
  %v110 = vpop.permute.xlu0 %109
  %111 = vset.pattern.permute.xlu0 0
  %112 = vperm.xlu0 %111, %v25
  %v113 = vpop.permute.xlu0 %112
  %114 = vset.pattern.permute.xlu0 0
  %115 = vperm.xlu0 %114, %v26
  %v116 = vpop.permute.xlu0 %115
  %117 = vset.pattern.permute.xlu0 0
  %118 = vperm.xlu0 %117, %v27
  %v119 = vpop.permute.xlu0 %118
  %120 = vset.pattern.permute.xlu0 0
  %121 = vperm.xlu0 %120, %v28
  %v122 = vpop.permute.xlu0 %121
  %123 = vset.pattern.permute.xlu0 0
  %124 = vperm.xlu0 %123, %v29
  %v125 = vpop.permute.xlu0 %124
  %126 = vset.pattern.permute.xlu0 0
  %127 = vperm.xlu0 %126, %v30
  %v128 = vpop.permute.xlu0 %127
  %129 = vset.pattern.permute.xlu0 0
  %130 = vperm.xlu0 %129, %v31
  %v131 = vpop.permute.xlu0 %130
  %132 = vset.pattern.permute.xlu0 0
  %133 = vperm.xlu0 %132, %v32
  %v134 = vpop.permute.xlu0 %133
  %135 = vset.pattern.permute.xlu0 0
  %136 = vperm.xlu0 %135, %v33
  %v137 = vpop.permute.xlu0 %136
  %138 = vset.pattern.permute.xlu0 0
  %139 = vperm.xlu0 %138, %v34
  %v140 = vpop.permute.xlu0 %139
  %141 = vset.pattern.permute.xlu0 0
  %142 = vperm.xlu0 %141, %v35
  %v143 = vpop.permute.xlu0 %142
  %144 = vset.pattern.permute.xlu0 0
  %145 = vperm.xlu0 %144, %v36
  %v146 = vpop.permute.xlu0 %145
  %147 = vset.pattern.permute.xlu0 0
  %148 = vperm.xlu0 %147, %v37
  %v149 = vpop.permute.xlu0 %148
  %150 = vset.pattern.permute.xlu0 0
  %151 = vperm.xlu0 %150, %v38
  %v152 = vpop.permute.xlu0 %151
  %153 = vset.pattern.permute.xlu0 0
  %154 = vperm.xlu0 %153, %v39
  %v155 = vpop.permute.xlu0 %154
  %156 = vset.pattern.permute.xlu0 0
  %157 = vperm.xlu0 %156, %v40
  %v158 = vpop.permute.xlu0 %157
  %159 = vset.pattern.permute.xlu0 0
  %160 = vperm.xlu0 %159, %v41
  %v161 = vpop.permute.xlu0 %160
  %162 = vset.pattern.permute.xlu0 0
  %163 = vperm.xlu0 %162, %v42
  %v164 = vpop.permute.xlu0 %163
  %165 = vset.pattern.permute.xlu0 0
  %166 = vperm.xlu0 %165, %v43
  %v167 = vpop.permute.xlu0 %166
  %168 = vset.pattern.permute.xlu0 0
  %169 = vperm.xlu0 %168, %v44
  %v170 = vpop.permute.xlu0 %169
  %171 = vset.pattern.permute.xlu0 0
  %172 = vperm.xlu0 %171, %v45
  %v173 = vpop.permute.xlu0 %172
  %174 = vset.pattern.permute.xlu0 0
  %175 = vperm.xlu0 %174, %v46
  %v176 = vpop.permute.xlu0 %175
  %177 = vset.pattern.permute.xlu0 0
  %178 = vperm.xlu0 %177, %v47
  %v179 = vpop.permute.xlu0 %178
  %180 = vset.pattern.permute.xlu0 0
  %181 = vperm.xlu0 %180, %v48
  %v182 = vpop.permute.xlu0 %181
  %183 = vset.pattern.permute.xlu0 0
  %184 = vperm.xlu0 %183, %v49
  %v185 = vpop.permute.xlu0 %184
  %186 = vset.pattern.permute.xlu0 0
  %187 = vperm.xlu0 %186, %v50
  %v188 = vpop.permute.xlu0 %187
  %189 = vset.pattern.permute.xlu0 0
  %190 = vperm.xlu0 %189, %v51
  %v191 = vpop.permute.xlu0 %190
  %192 = vset.pattern.permute.xlu0 0
  %193 = vperm.xlu0 %192, %v52
  %v194 = vpop.permute.xlu0 %193
  %195 = vset.pattern.permute.xlu0 0
  %196 = vperm.xlu0 %195, %v53
  %v197 = vpop.permute.xlu0 %196
  %198 = vset.pattern.permute.xlu0 0
  %199 = vperm.xlu0 %198, %v54
  %v200 = vpop.permute.xlu0 %199
  %201 = vset.pattern.permute.xlu0 0
  %202 = vperm.xlu0 %201, %v55
  %v203 = vpop.permute.xlu0 %202
  %204 = vset.pattern.permute.xlu0 0
  %205 = vperm.xlu0 %204, %v56
  %v206 = vpop.permute.xlu0 %205
  %207 = vset.pattern.permute.xlu0 0
  %208 = vperm.xlu0 %207, %v57
  %v209 = vpop.permute.xlu0 %208
  %210 = vset.pattern.permute.xlu0 0
  %211 = vperm.xlu0 %210, %v58
  %v212 = vpop.permute.xlu0 %211
  %213 = vset.pattern.permute.xlu0 0
  %214 = vperm.xlu0 %213, %v59
  %v215 = vpop.permute.xlu0 %214
  %216 = vset.pattern.permute.xlu0 0
  %217 = vperm.xlu0 %216, %v60
  %v218 = vpop.permute.xlu0 %217
  %219 = vset.pattern.permute.xlu0 0
  %220 = vperm.xlu0 %219, %v61
  %v221 = vpop.permute.xlu0 %220
  %222 = vset.pattern.permute.xlu0 0
  %223 = vperm.xlu0 %222, %v62
  %v224 = vpop.permute.xlu0 %223
  %225 = vset.pattern.permute.xlu0 0
  %226 = vperm.xlu0 %225, %v63
  %v227 = vpop.permute.xlu0 %226
  %228 = vset.pattern.permute.xlu0 0
  %229 = vperm.xlu0 %228, %v64
  %v230 = vpop.permute.xlu0 %229
  %231 = vset.pattern.permute.xlu0 0
  %232 = vperm.xlu0 %231, %v65
  %v233 = vpop.permute.xlu0 %232
  %234 = vset.pattern.permute.xlu0 0
  %235 = vperm.xlu0 %234, %v66
  %v236 = vpop.permute.xlu0 %235
  %237 = vset.pattern.permute.xlu0 0
  %238 = vperm.xlu0 %237, %v67
  %v239 = vpop.permute.xlu0 %238
  %240 = vset.pattern.permute.xlu0 0
  %241 = vperm.xlu0 %240, %v68
  %v242 = vpop.permute.xlu0 %241
  %243 = vset.pattern.permute.xlu0 0
  %244 = vperm.xlu0 %243, %v69
  %v245 = vpop.permute.xlu0 %244
  %246 = vset.pattern.permute.xlu0 0
  %247 = vperm.xlu0 %246, %v70
  %v248 = vpop.permute.xlu0 %247
  %249 = vset.pattern.permute.xlu0 0
  %250 = vperm.xlu0 %249, %v71
  %v251 = vpop.permute.xlu0 %250
  %252 = vset.pattern.permute.xlu0 0
  %253 = vperm.xlu0 %252, %v72
  %v254 = vpop.permute.xlu0 %253
  %255 = vset.pattern.permute.xlu0 0
  %256 = vperm.xlu0 %255, %v73
  %v257 = vpop.permute.xlu0 %256
  %258 = vset.pattern.permute.xlu0 0
  %259 = vperm.xlu0 %258, %v74
  %v260 = vpop.permute.xlu0 %259
  %261 = vset.pattern.permute.xlu0 0
  %262 = vperm.xlu0 %261, %v75
  %v263 = vpop.permute.xlu0 %262
  %264 = vset.pattern.permute.xlu0 0
  %265 = vperm.xlu0 %264, %v76
  %v266 = vpop.permute.xlu0 %265
  %267 = vset.pattern.permute.xlu0 0
  %268 = vperm.xlu0 %267, %v77
  %v269 = vpop.permute.xlu0 %268
  %270 = vset.pattern.permute.xlu0 0
  %271 = vperm.xlu0 %270, %v78
  %v272 = vpop.permute.xlu0 %271
  %vm273 = vcmp.eq.s32.totalorder %v80, %v83
  %vm274 = vcmp.eq.s32.totalorder %v80, %v86
  %vm275 = vcmp.eq.s32.totalorder %v80, %v89
  %vm276 = vcmp.eq.s32.totalorder %v80, %v92
  %vm277 = vcmp.eq.s32.totalorder %v80, %v95
  %vm278 = vcmp.eq.s32.totalorder %v80, %v98
  %vm279 = vcmp.eq.s32.totalorder %v80, %v101
  %vm280 = vcmp.eq.s32.totalorder %v80, %v104
  %vm281 = vcmp.eq.s32.totalorder %v80, %v107
  %vm282 = vcmp.eq.s32.totalorder %v80, %v110
  %vm283 = vcmp.eq.s32.totalorder %v80, %v113
  %vm284 = vcmp.eq.s32.totalorder %v80, %v116
  %vm285 = vcmp.eq.s32.totalorder %v80, %v119
  %vm286 = vcmp.eq.s32.totalorder %v80, %v122
  %vm287 = vcmp.eq.s32.totalorder %v80, %v125
  %vm288 = vcmp.eq.s32.totalorder %v80, %v128
  %vm289 = vcmp.eq.s32.totalorder %v80, %v131
  %vm290 = vcmp.eq.s32.totalorder %v80, %v134
  %vm291 = vcmp.eq.s32.totalorder %v80, %v137
  %vm292 = vcmp.eq.s32.totalorder %v80, %v140
  %vm293 = vcmp.eq.s32.totalorder %v80, %v143
  %vm294 = vcmp.eq.s32.totalorder %v80, %v146
  %vm295 = vcmp.eq.s32.totalorder %v80, %v149
  %vm296 = vcmp.eq.s32.totalorder %v80, %v152
  %vm297 = vcmp.eq.s32.totalorder %v80, %v155
  %vm298 = vcmp.eq.s32.totalorder %v80, %v158
  %vm299 = vcmp.eq.s32.totalorder %v80, %v161
  %vm300 = vcmp.eq.s32.totalorder %v80, %v164
  %vm301 = vcmp.eq.s32.totalorder %v80, %v167
  %vm302 = vcmp.eq.s32.totalorder %v80, %v170
  %vm303 = vcmp.eq.s32.totalorder %v80, %v173
  %vm304 = vcmp.eq.s32.totalorder %v80, %v176
  %vm305 = vcmp.eq.s32.totalorder %v80, %v179
  %vm306 = vcmp.eq.s32.totalorder %v80, %v182
  %vm307 = vcmp.eq.s32.totalorder %v80, %v185
  %vm308 = vcmp.eq.s32.totalorder %v80, %v188
  %vm309 = vcmp.eq.s32.totalorder %v80, %v191
  %vm310 = vcmp.eq.s32.totalorder %v80, %v194
  %vm311 = vcmp.eq.s32.totalorder %v80, %v197
  %vm312 = vcmp.eq.s32.totalorder %v80, %v200
  %vm313 = vcmp.eq.s32.totalorder %v80, %v203
  %vm314 = vcmp.eq.s32.totalorder %v80, %v206
  %vm315 = vcmp.eq.s32.totalorder %v80, %v209
  %vm316 = vcmp.eq.s32.totalorder %v80, %v212
  %vm317 = vcmp.eq.s32.totalorder %v80, %v215
  %vm318 = vcmp.eq.s32.totalorder %v80, %v218
  %vm319 = vcmp.eq.s32.totalorder %v80, %v221
  %vm320 = vcmp.eq.s32.totalorder %v80, %v224
  %vm321 = vcmp.eq.s32.totalorder %v80, %v227
  %vm322 = vcmp.eq.s32.totalorder %v80, %v230
  %vm323 = vcmp.eq.s32.totalorder %v80, %v233
  %vm324 = vcmp.eq.s32.totalorder %v80, %v236
  %vm325 = vcmp.eq.s32.totalorder %v80, %v239
  %vm326 = vcmp.eq.s32.totalorder %v80, %v242
  %vm327 = vcmp.eq.s32.totalorder %v80, %v245
  %vm328 = vcmp.eq.s32.totalorder %v80, %v248
  %vm329 = vcmp.eq.s32.totalorder %v80, %v251
  %vm330 = vcmp.eq.s32.totalorder %v80, %v254
  %vm331 = vcmp.eq.s32.totalorder %v80, %v257
  %vm332 = vcmp.eq.s32.totalorder %v80, %v260
  %vm333 = vcmp.eq.s32.totalorder %v80, %v263
  %vm334 = vcmp.eq.s32.totalorder %v80, %v266
  %vm335 = vcmp.eq.s32.totalorder %v80, %v269
  %vm336 = vcmp.eq.s32.totalorder %v80, %v272
  %v337 = vsel %vm273, 1, 0
  %v338 = vsel %vm274, 1, 0
  %v339 = vsel %vm275, 1, 0
  %v340 = vsel %vm276, 1, 0
  %v341 = vsel %vm277, 1, 0
  %v342 = vsel %vm278, 1, 0
  %v343 = vsel %vm279, 1, 0
  %v344 = vsel %vm280, 1, 0
  %v345 = vsel %vm281, 1, 0
  %v346 = vsel %vm282, 1, 0
  %v347 = vsel %vm283, 1, 0
  %v348 = vsel %vm284, 1, 0
  %v349 = vsel %vm285, 1, 0
  %v350 = vsel %vm286, 1, 0
  %v351 = vsel %vm287, 1, 0
  %v352 = vsel %vm288, 1, 0
  %v353 = vsel %vm289, 1, 0
  %v354 = vsel %vm290, 1, 0
  %v355 = vsel %vm291, 1, 0
  %v356 = vsel %vm292, 1, 0
  %v357 = vsel %vm293, 1, 0
  %v358 = vsel %vm294, 1, 0
  %v359 = vsel %vm295, 1, 0
  %v360 = vsel %vm296, 1, 0
  %v361 = vsel %vm297, 1, 0
  %v362 = vsel %vm298, 1, 0
  %v363 = vsel %vm299, 1, 0
  %v364 = vsel %vm300, 1, 0
  %v365 = vsel %vm301, 1, 0
  %v366 = vsel %vm302, 1, 0
  %v367 = vsel %vm303, 1, 0
  %v368 = vsel %vm304, 1, 0
  %v369 = vsel %vm305, 1, 0
  %v370 = vsel %vm306, 1, 0
  %v371 = vsel %vm307, 1, 0
  %v372 = vsel %vm308, 1, 0
  %v373 = vsel %vm309, 1, 0
  %v374 = vsel %vm310, 1, 0
  %v375 = vsel %vm311, 1, 0
  %v376 = vsel %vm312, 1, 0
  %v377 = vsel %vm313, 1, 0
  %v378 = vsel %vm314, 1, 0
  %v379 = vsel %vm315, 1, 0
  %v380 = vsel %vm316, 1, 0
  %v381 = vsel %vm317, 1, 0
  %v382 = vsel %vm318, 1, 0
  %v383 = vsel %vm319, 1, 0
  %v384 = vsel %vm320, 1, 0
  %v385 = vsel %vm321, 1, 0
  %v386 = vsel %vm322, 1, 0
  %v387 = vsel %vm323, 1, 0
  %v388 = vsel %vm324, 1, 0
  %v389 = vsel %vm325, 1, 0
  %v390 = vsel %vm326, 1, 0
  %v391 = vsel %vm327, 1, 0
  %v392 = vsel %vm328, 1, 0
  %v393 = vsel %vm329, 1, 0
  %v394 = vsel %vm330, 1, 0
  %v395 = vsel %vm331, 1, 0
  %v396 = vsel %vm332, 1, 0
  %v397 = vsel %vm333, 1, 0
  %v398 = vsel %vm334, 1, 0
  %v399 = vsel %vm335, 1, 0
  %v400 = vsel %vm336, 1, 0
  %v401 = vcvt.s32.f32 %v337
  %v402 = vcvt.s32.f32 %v338
  %v403 = vcvt.s32.f32 %v339
  %v404 = vcvt.s32.f32 %v340
  %v405 = vcvt.s32.f32 %v341
  %v406 = vcvt.s32.f32 %v342
  %v407 = vcvt.s32.f32 %v343
  %v408 = vcvt.s32.f32 %v344
  %v409 = vcvt.s32.f32 %v345
  %v410 = vcvt.s32.f32 %v346
  %v411 = vcvt.s32.f32 %v347
  %v412 = vcvt.s32.f32 %v348
  %v413 = vcvt.s32.f32 %v349
  %v414 = vcvt.s32.f32 %v350
  %v415 = vcvt.s32.f32 %v351
  %v416 = vcvt.s32.f32 %v352
  %v417 = vcvt.s32.f32 %v353
  %v418 = vcvt.s32.f32 %v354
  %v419 = vcvt.s32.f32 %v355
  %v420 = vcvt.s32.f32 %v356
  %v421 = vcvt.s32.f32 %v357
  %v422 = vcvt.s32.f32 %v358
  %v423 = vcvt.s32.f32 %v359
  %v424 = vcvt.s32.f32 %v360
  %v425 = vcvt.s32.f32 %v361
  %v426 = vcvt.s32.f32 %v362
  %v427 = vcvt.s32.f32 %v363
  %v428 = vcvt.s32.f32 %v364
  %v429 = vcvt.s32.f32 %v365
  %v430 = vcvt.s32.f32 %v366
  %v431 = vcvt.s32.f32 %v367
  %v432 = vcvt.s32.f32 %v368
  %v433 = vcvt.s32.f32 %v369
  %v434 = vcvt.s32.f32 %v370
  %v435 = vcvt.s32.f32 %v371
  %v436 = vcvt.s32.f32 %v372
  %v437 = vcvt.s32.f32 %v373
  %v438 = vcvt.s32.f32 %v374
  %v439 = vcvt.s32.f32 %v375
  %v440 = vcvt.s32.f32 %v376
  %v441 = vcvt.s32.f32 %v377
  %v442 = vcvt.s32.f32 %v378
  %v443 = vcvt.s32.f32 %v379
  %v444 = vcvt.s32.f32 %v380
  %v445 = vcvt.s32.f32 %v381
  %v446 = vcvt.s32.f32 %v382
  %v447 = vcvt.s32.f32 %v383
  %v448 = vcvt.s32.f32 %v384
  %v449 = vcvt.s32.f32 %v385
  %v450 = vcvt.s32.f32 %v386
  %v451 = vcvt.s32.f32 %v387
  %v452 = vcvt.s32.f32 %v388
  %v453 = vcvt.s32.f32 %v389
  %v454 = vcvt.s32.f32 %v390
  %v455 = vcvt.s32.f32 %v391
  %v456 = vcvt.s32.f32 %v392
  %v457 = vcvt.s32.f32 %v393
  %v458 = vcvt.s32.f32 %v394
  %v459 = vcvt.s32.f32 %v395
  %v460 = vcvt.s32.f32 %v396
  %v461 = vcvt.s32.f32 %v397
  %v462 = vcvt.s32.f32 %v398
  %v463 = vcvt.s32.f32 %v399
  %v464 = vcvt.s32.f32 %v400
  %v465 = vld [vmem:[%s0] sm:$0xff]
  %v466 = vld [vmem:[%s0 + $0x8] sm:$0xff]
  %v467 = vld [vmem:[%s0 + $0x10] sm:$0xff]
  %v468 = vld [vmem:[%s0 + $0x18] sm:$0xff]
  %v469 = vld [vmem:[%s0 + $0x20] sm:$0xff]
  %v470 = vld [vmem:[%s0 + $0x28] sm:$0xff]
  %v471 = vld [vmem:[%s0 + $0x30] sm:$0xff]
  %v472 = vld [vmem:[%s0 + $0x38] sm:$0xff]
  %v473 = vld [vmem:[%s0 + $0x40] sm:$0xff]
  %v474 = vld [vmem:[%s0 + $0x48] sm:$0xff]
  %v475 = vld [vmem:[%s0 + $0x50] sm:$0xff]
  %v476 = vld [vmem:[%s0 + $0x58] sm:$0xff]
  %v477 = vld [vmem:[%s0 + $0x60] sm:$0xff]
  %v478 = vld [vmem:[%s0 + $0x68] sm:$0xff]
  %v479 = vld [vmem:[%s0 + $0x70] sm:$0xff]
  %v480 = vld [vmem:[%s0 + $0x78] sm:$0xff]
  %v481 = vld [vmem:[%s0 + $0x80] sm:$0xff]
  %v482 = vld [vmem:[%s0 + $0x88] sm:$0xff]
  %v483 = vld [vmem:[%s0 + $0x90] sm:$0xff]
  %v484 = vld [vmem:[%s0 + $0x98] sm:$0xff]
  %v485 = vld [vmem:[%s0 + $0xa0] sm:$0xff]
  %v486 = vld [vmem:[%s0 + $0xa8] sm:$0xff]
  %v487 = vld [vmem:[%s0 + $0xb0] sm:$0xff]
  %v488 = vld [vmem:[%s0 + $0xb8] sm:$0xff]
  %v489 = vld [vmem:[%s0 + $0xc0] sm:$0xff]
  %v490 = vld [vmem:[%s0 + $0xc8] sm:$0xff]
  %v491 = vld [vmem:[%s0 + $0xd0] sm:$0xff]
  %v492 = vld [vmem:[%s0 + $0xd8] sm:$0xff]
  %v493 = vld [vmem:[%s0 + $0xe0] sm:$0xff]
  %v494 = vld [vmem:[%s0 + $0xe8] sm:$0xff]
  %v495 = vld [vmem:[%s0 + $0xf0] sm:$0xff]
  %v496 = vld [vmem:[%s0 + $0xf8] sm:$0xff]
  %v497 = vld [vmem:[%s0 + $0x100] sm:$0xff]
  %v498 = vld [vmem:[%s0 + $0x108] sm:$0xff]
  %v499 = vld [vmem:[%s0 + $0x110] sm:$0xff]
  %v500 = vld [vmem:[%s0 + $0x118] sm:$0xff]
  %v501 = vld [vmem:[%s0 + $0x120] sm:$0xff]
  %v502 = vld [vmem:[%s0 + $0x128] sm:$0xff]
  %v503 = vld [vmem:[%s0 + $0x130] sm:$0xff]
  %v504 = vld [vmem:[%s0 + $0x138] sm:$0xff]
  %v505 = vld [vmem:[%s0 + $0x140] sm:$0xff]
  %v506 = vld [vmem:[%s0 + $0x148] sm:$0xff]
  %v507 = vld [vmem:[%s0 + $0x150] sm:$0xff]
  %v508 = vld [vmem:[%s0 + $0x158] sm:$0xff]
  %v509 = vld [vmem:[%s0 + $0x160] sm:$0xff]
  %v510 = vld [vmem:[%s0 + $0x168] sm:$0xff]
  %v511 = vld [vmem:[%s0 + $0x170] sm:$0xff]
  %v512 = vld [vmem:[%s0 + $0x178] sm:$0xff]
  %v513 = vld [vmem:[%s0 + $0x180] sm:$0xff]
  %v514 = vld [vmem:[%s0 + $0x188] sm:$0xff]
  %v515 = vld [vmem:[%s0 + $0x190] sm:$0xff]
  %v516 = vld [vmem:[%s0 + $0x198] sm:$0xff]
  %v517 = vld [vmem:[%s0 + $0x1a0] sm:$0xff]
  %v518 = vld [vmem:[%s0 + $0x1a8] sm:$0xff]
  %v519 = vld [vmem:[%s0 + $0x1b0] sm:$0xff]
  %v520 = vld [vmem:[%s0 + $0x1b8] sm:$0xff]
  %v521 = vld [vmem:[%s0 + $0x1c0] sm:$0xff]
  %v522 = vld [vmem:[%s0 + $0x1c8] sm:$0xff]
  %v523 = vld [vmem:[%s0 + $0x1d0] sm:$0xff]
  %v524 = vld [vmem:[%s0 + $0x1d8] sm:$0xff]
  %v525 = vld [vmem:[%s0 + $0x1e0] sm:$0xff]
  %v526 = vld [vmem:[%s0 + $0x1e8] sm:$0xff]
  %v527 = vld [vmem:[%s0 + $0x1f0] sm:$0xff]
  %v528 = vld [vmem:[%s0 + $0x1f8] sm:$0xff]
  %v529 = vpack.c.bf16 %v466, %v465
  %v530 = vpack.c.bf16 %v468, %v467
  %v531 = vpack.c.bf16 %v470, %v469
  %v532 = vpack.c.bf16 %v472, %v471
  %v533 = vpack.c.bf16 %v474, %v473
  %v534 = vpack.c.bf16 %v476, %v475
  %v535 = vpack.c.bf16 %v478, %v477
  %v536 = vpack.c.bf16 %v480, %v479
  %v537 = vpack.c.bf16 %v482, %v481
  %v538 = vpack.c.bf16 %v484, %v483
  %v539 = vpack.c.bf16 %v486, %v485
  %v540 = vpack.c.bf16 %v488, %v487
  %v541 = vpack.c.bf16 %v490, %v489
  %v542 = vpack.c.bf16 %v492, %v491
  %v543 = vpack.c.bf16 %v494, %v493
  %v544 = vpack.c.bf16 %v496, %v495
  %v545 = vpack.c.bf16 %v498, %v497
  %v546 = vpack.c.bf16 %v500, %v499
  %v547 = vpack.c.bf16 %v502, %v501
  %v548 = vpack.c.bf16 %v504, %v503
  %v549 = vpack.c.bf16 %v506, %v505
  %v550 = vpack.c.bf16 %v508, %v507
  %v551 = vpack.c.bf16 %v510, %v509
  %v552 = vpack.c.bf16 %v512, %v511
  %v553 = vpack.c.bf16 %v514, %v513
  %v554 = vpack.c.bf16 %v516, %v515
  %v555 = vpack.c.bf16 %v518, %v517
  %v556 = vpack.c.bf16 %v520, %v519
  %v557 = vpack.c.bf16 %v522, %v521
  %v558 = vpack.c.bf16 %v524, %v523
  %v559 = vpack.c.bf16 %v526, %v525
  %v560 = vpack.c.bf16 %v528, %v527
  %v561 = vpack.c.bf16 %v402, %v401
  %v562 = vpack.c.bf16 %v404, %v403
  %v563 = vpack.c.bf16 %v406, %v405
  %v564 = vpack.c.bf16 %v408, %v407
  %v565 = vpack.c.bf16 %v410, %v409
  %v566 = vpack.c.bf16 %v412, %v411
  %v567 = vpack.c.bf16 %v414, %v413
  %v568 = vpack.c.bf16 %v416, %v415
  %v569 = vpack.c.bf16 %v418, %v417
  %v570 = vpack.c.bf16 %v420, %v419
  %v571 = vpack.c.bf16 %v422, %v421
  %v572 = vpack.c.bf16 %v424, %v423
  %v573 = vpack.c.bf16 %v426, %v425
  %v574 = vpack.c.bf16 %v428, %v427
  %v575 = vpack.c.bf16 %v430, %v429
  %v576 = vpack.c.bf16 %v432, %v431
  %v577 = vpack.c.bf16 %v434, %v433
  %v578 = vpack.c.bf16 %v436, %v435
  %v579 = vpack.c.bf16 %v438, %v437
  %v580 = vpack.c.bf16 %v440, %v439
  %v581 = vpack.c.bf16 %v442, %v441
  %v582 = vpack.c.bf16 %v444, %v443
  %v583 = vpack.c.bf16 %v446, %v445
  %v584 = vpack.c.bf16 %v448, %v447
  %v585 = vpack.c.bf16 %v450, %v449
  %v586 = vpack.c.bf16 %v452, %v451
  %v587 = vpack.c.bf16 %v454, %v453
  %v588 = vpack.c.bf16 %v456, %v455
  %v589 = vpack.c.bf16 %v458, %v457
  %v590 = vpack.c.bf16 %v460, %v459
  %v591 = vpack.c.bf16 %v462, %v461
  %v592 = vpack.c.bf16 %v464, %v463
  %625 = vrot.lane.b32.xlu0 %v561, 8
  %v626 = vpop.permute.xlu0 %625
  %627 = vrot.lane.b32.xlu0 %v562, 8
  %v628 = vpop.permute.xlu0 %627
  %629 = vrot.lane.b32.xlu0 %v563, 8
  %v630 = vpop.permute.xlu0 %629
  %631 = vrot.lane.b32.xlu0 %v564, 8
  %v632 = vpop.permute.xlu0 %631
  %633 = vrot.lane.b32.xlu0 %v565, 8
  %v634 = vpop.permute.xlu0 %633
  %635 = vrot.lane.b32.xlu0 %v566, 8
  %v636 = vpop.permute.xlu0 %635
  %637 = vrot.lane.b32.xlu0 %v567, 8
  %v638 = vpop.permute.xlu0 %637
  %639 = vrot.lane.b32.xlu0 %v568, 8
  %v640 = vpop.permute.xlu0 %639
  %641 = vrot.lane.b32.xlu0 %v569, 8
  %v642 = vpop.permute.xlu0 %641
  %643 = vrot.lane.b32.xlu0 %v570, 8
  %v644 = vpop.permute.xlu0 %643
  %645 = vrot.lane.b32.xlu0 %v571, 8
  %v646 = vpop.permute.xlu0 %645
  %647 = vrot.lane.b32.xlu0 %v572, 8
  %v648 = vpop.permute.xlu0 %647
  %649 = vrot.lane.b32.xlu0 %v573, 8
  %v650 = vpop.permute.xlu0 %649
  %651 = vrot.lane.b32.xlu0 %v574, 8
  %v652 = vpop.permute.xlu0 %651
  %653 = vrot.lane.b32.xlu0 %v575, 8
  %v654 = vpop.permute.xlu0 %653
  %655 = vrot.lane.b32.xlu0 %v576, 8
  %v656 = vpop.permute.xlu0 %655
  %657 = vrot.lane.b32.xlu0 %v577, 8
  %v658 = vpop.permute.xlu0 %657
  %659 = vrot.lane.b32.xlu0 %v578, 8
  %v660 = vpop.permute.xlu0 %659
  %661 = vrot.lane.b32.xlu0 %v579, 8
  %v662 = vpop.permute.xlu0 %661
  %663 = vrot.lane.b32.xlu0 %v580, 8
  %v664 = vpop.permute.xlu0 %663
  %665 = vrot.lane.b32.xlu0 %v581, 8
  %v666 = vpop.permute.xlu0 %665
  %667 = vrot.lane.b32.xlu0 %v582, 8
  %v668 = vpop.permute.xlu0 %667
  %669 = vrot.lane.b32.xlu0 %v583, 8
  %v670 = vpop.permute.xlu0 %669
  %671 = vrot.lane.b32.xlu0 %v584, 8
  %v672 = vpop.permute.xlu0 %671
  %673 = vrot.lane.b32.xlu0 %v585, 8
  %v674 = vpop.permute.xlu0 %673
  %675 = vrot.lane.b32.xlu0 %v586, 8
  %v676 = vpop.permute.xlu0 %675
  %677 = vrot.lane.b32.xlu0 %v587, 8
  %v678 = vpop.permute.xlu0 %677
  %679 = vrot.lane.b32.xlu0 %v588, 8
  %v680 = vpop.permute.xlu0 %679
  %681 = vrot.lane.b32.xlu0 %v589, 8
  %v682 = vpop.permute.xlu0 %681
  %683 = vrot.lane.b32.xlu0 %v590, 8
  %v684 = vpop.permute.xlu0 %683
  %685 = vrot.lane.b32.xlu0 %v591, 8
  %v686 = vpop.permute.xlu0 %685
  %687 = vrot.lane.b32.xlu0 %v592, 8
  %v688 = vpop.permute.xlu0 %687
  %vm689 = vcmask 64512
  %v692 = vsel %vm689, %v529, %v626
  %v695 = vsel %vm689, %v530, %v628
  %v698 = vsel %vm689, %v531, %v630
  %v701 = vsel %vm689, %v532, %v632
  %v704 = vsel %vm689, %v533, %v634
  %v707 = vsel %vm689, %v534, %v636
  %v710 = vsel %vm689, %v535, %v638
  %v713 = vsel %vm689, %v536, %v640
  %v716 = vsel %vm689, %v537, %v642
  %v719 = vsel %vm689, %v538, %v644
  %v722 = vsel %vm689, %v539, %v646
  %v725 = vsel %vm689, %v540, %v648
  %v728 = vsel %vm689, %v541, %v650
  %v731 = vsel %vm689, %v542, %v652
  %v734 = vsel %vm689, %v543, %v654
  %v737 = vsel %vm689, %v544, %v656
  %v740 = vsel %vm689, %v545, %v658
  %v743 = vsel %vm689, %v546, %v660
  %v746 = vsel %vm689, %v547, %v662
  %v749 = vsel %vm689, %v548, %v664
  %v752 = vsel %vm689, %v549, %v666
  %v755 = vsel %vm689, %v550, %v668
  %v758 = vsel %vm689, %v551, %v670
  %v761 = vsel %vm689, %v552, %v672
  %v764 = vsel %vm689, %v553, %v674
  %v767 = vsel %vm689, %v554, %v676
  %v770 = vsel %vm689, %v555, %v678
  %v773 = vsel %vm689, %v556, %v680
  %v776 = vsel %vm689, %v557, %v682
  %v779 = vsel %vm689, %v558, %v684
  %v782 = vsel %vm689, %v559, %v686
  %v785 = vsel %vm689, %v560, %v688
  %v786 = vld [vmem:[%s2] sm:$0xf]
  %v787 = vld [vmem:[%s2 + $0x4] sm:$0x1]
  %v790 = vunpack.c.l.b16 %v786
  %v791 = vunpack.c.l.b16 %v787
  %v792 = vpack.c.b16 %v791, %v790
  %vm793 = vcmask 80896
  %v794 = vsel %vm793, %v692, 0
  %v796 = vsel %vm793, %v695, 0
  %v798 = vsel %vm793, %v698, 0
  %v800 = vsel %vm793, %v701, 0
  %v802 = vsel %vm793, %v704, 0
  %v804 = vsel %vm793, %v707, 0
  %v806 = vsel %vm793, %v710, 0
  %v808 = vsel %vm793, %v713, 0
  %v810 = vsel %vm793, %v716, 0
  %v812 = vsel %vm793, %v719, 0
  %v814 = vsel %vm793, %v722, 0
  %v816 = vsel %vm793, %v725, 0
  %v818 = vsel %vm793, %v728, 0
  %v820 = vsel %vm793, %v731, 0
  %v822 = vsel %vm793, %v734, 0
  %v824 = vsel %vm793, %v737, 0
  %v826 = vsel %vm793, %v740, 0
  %v828 = vsel %vm793, %v743, 0
  %v830 = vsel %vm793, %v746, 0
  %v832 = vsel %vm793, %v749, 0
  %v834 = vsel %vm793, %v752, 0
  %v836 = vsel %vm793, %v755, 0
  %v838 = vsel %vm793, %v758, 0
  %v840 = vsel %vm793, %v761, 0
  %v842 = vsel %vm793, %v764, 0
  %v844 = vsel %vm793, %v767, 0
  %v846 = vsel %vm793, %v770, 0
  %v848 = vsel %vm793, %v773, 0
  %v850 = vsel %vm793, %v776, 0
  %v852 = vsel %vm793, %v779, 0
  %v854 = vsel %vm793, %v782, 0
  %v856 = vsel %vm793, %v785, 0
  %vm858 = vcmask 1044480
  %v860 = vsel %vm858, %v792, 0
  %862 = vmatprep.subr.bf16.mxu0 0
  %863 = vmatpush1.bf16.msra.mxu0 %v860
  %864 = vmatprep.subr.bf16.mxu0 0
  %865 = vmatpush1.bf16.msra.mxu0 0
  %866 = vmatprep.subr.bf16.mxu0 0
  %867 = vmatpush1.bf16.msra.mxu0 0
  %868 = vmatprep.subr.bf16.mxu0 0
  %869 = vmatpush1.bf16.msra.mxu0 0
  %870 = vmatprep.subr.bf16.mxu0 0
  %871 = vmatpush1.bf16.msra.mxu0 0
  %872 = vmatprep.subr.bf16.mxu0 0
  %873 = vmatpush1.bf16.msra.mxu0 0
  %874 = vmatprep.subr.bf16.mxu0 0
  %875 = vmatpush1.bf16.msra.mxu0 0
  %876 = vmatprep.subr.bf16.mxu0 0
  %877 = vmatpush1.bf16.msra.mxu0 0
  %878 = vmatprep.subr.bf16.mxu0 0
  %879 = vmatpush1.bf16.msra.mxu0 0
  %880 = vmatprep.subr.bf16.mxu0 0
  %881 = vmatpush1.bf16.msra.mxu0 0
  %882 = vmatprep.subr.bf16.mxu0 0
  %883 = vmatpush1.bf16.msra.mxu0 0
  %884 = vmatprep.subr.bf16.mxu0 0
  %885 = vmatpush1.bf16.msra.mxu0 0
  %886 = vmatprep.subr.bf16.mxu0 0
  %887 = vmatpush1.bf16.msra.mxu0 0
  %888 = vmatprep.subr.bf16.mxu0 0
  %889 = vmatpush1.bf16.msra.mxu0 0
  %890 = vmatprep.subr.bf16.mxu0 0
  %891 = vmatpush1.bf16.msra.mxu0 0
  %892 = vmatprep.subr.bf16.mxu0 0
  %893 = vmatpush1.bf16.msra.mxu0 0
  %894 = vmatprep.mubr.bf16.mxu0 0
  %895 = vmatmul.mubr.bf16.gmra.mrb[0].mxu0 %v794
  %v896 = vpop.f32.mrb[0].mxu0
  %v897 = vadd.f32 0.0, %v896
  %v898 = vpop.f32.mrb[0].mxu0
  %v899 = vpop.f32.mrb[0].mxu0
  %v900 = vadd.f32 0.0, %v899
  %v901 = vpop.f32.mrb[0].mxu0
  %902 = vmatprep.mubr.bf16.mxu0 0
  %903 = vmatmul.mubr.bf16.gmra.mrb[0].mxu0 %v796
  %v904 = vpop.f32.mrb[0].mxu0
  %v905 = vadd.f32 0.0, %v904
  %v906 = vpop.f32.mrb[0].mxu0
  %v907 = vpop.f32.mrb[0].mxu0
  %v908 = vadd.f32 0.0, %v907
  %v909 = vpop.f32.mrb[0].mxu0
  %910 = vmatprep.mubr.bf16.mxu0 0
  %911 = vmatmul.mubr.bf16.gmra.mrb[0].mxu0 %v798
  %v912 = vpop.f32.mrb[0].mxu0
  %v913 = vadd.f32 0.0, %v912
  %v914 = vpop.f32.mrb[0].mxu0
  %v915 = vpop.f32.mrb[0].mxu0
  %v916 = vadd.f32 0.0, %v915
  %v917 = vpop.f32.mrb[0].mxu0
  %918 = vmatprep.mubr.bf16.mxu0 0
  %919 = vmatmul.mubr.bf16.gmra.mrb[0].mxu0 %v800
  %v920 = vpop.f32.mrb[0].mxu0
  %v921 = vadd.f32 0.0, %v920
  %v922 = vpop.f32.mrb[0].mxu0
  %v923 = vpop.f32.mrb[0].mxu0
  %v924 = vadd.f32 0.0, %v923
  %v925 = vpop.f32.mrb[0].mxu0
  %926 = vmatprep.mubr.bf16.mxu0 0
  %927 = vmatmul.mubr.bf16.gmra.mrb[0].mxu0 %v802
  %v928 = vpop.f32.mrb[0].mxu0
  %v929 = vadd.f32 0.0, %v928
  %v930 = vpop.f32.mrb[0].mxu0
  %v931 = vpop.f32.mrb[0].mxu0
  %v932 = vadd.f32 0.0, %v931
  %v933 = vpop.f32.mrb[0].mxu0
  %934 = vmatprep.mubr.bf16.mxu0 0
  %935 = vmatmul.mubr.bf16.gmra.mrb[0].mxu0 %v804
  %v936 = vpop.f32.mrb[0].mxu0
  %v937 = vadd.f32 0.0, %v936
  %v938 = vpop.f32.mrb[0].mxu0
  %v939 = vpop.f32.mrb[0].mxu0
  %v940 = vadd.f32 0.0, %v939
  %v941 = vpop.f32.mrb[0].mxu0
  %942 = vmatprep.mubr.bf16.mxu0 0
  %943 = vmatmul.mubr.bf16.gmra.mrb[0].mxu0 %v806
  %v944 = vpop.f32.mrb[0].mxu0
  %v945 = vadd.f32 0.0, %v944
  %v946 = vpop.f32.mrb[0].mxu0
  %v947 = vpop.f32.mrb[0].mxu0
  %v948 = vadd.f32 0.0, %v947
  %v949 = vpop.f32.mrb[0].mxu0
  %950 = vmatprep.mubr.bf16.mxu0 0
  %951 = vmatmul.mubr.bf16.gmra.mrb[0].mxu0 %v808
  %v952 = vpop.f32.mrb[0].mxu0
  %v953 = vadd.f32 0.0, %v952
  %v954 = vpop.f32.mrb[0].mxu0
  %v955 = vpop.f32.mrb[0].mxu0
  %v956 = vadd.f32 0.0, %v955
  %v957 = vpop.f32.mrb[0].mxu0
  %958 = vmatprep.mubr.bf16.mxu0 0
  %959 = vmatmul.mubr.bf16.gmra.mrb[0].mxu0 %v810
  %v960 = vpop.f32.mrb[0].mxu0
  %v961 = vadd.f32 0.0, %v960
  %v962 = vpop.f32.mrb[0].mxu0
  %v963 = vpop.f32.mrb[0].mxu0
  %v964 = vadd.f32 0.0, %v963
  %v965 = vpop.f32.mrb[0].mxu0
  %966 = vmatprep.mubr.bf16.mxu0 0
  %967 = vmatmul.mubr.bf16.gmra.mrb[0].mxu0 %v812
  %v968 = vpop.f32.mrb[0].mxu0
  %v969 = vadd.f32 0.0, %v968
  %v970 = vpop.f32.mrb[0].mxu0
  %v971 = vpop.f32.mrb[0].mxu0
  %v972 = vadd.f32 0.0, %v971
  %v973 = vpop.f32.mrb[0].mxu0
  %974 = vmatprep.mubr.bf16.mxu0 0
  %975 = vmatmul.mubr.bf16.gmra.mrb[0].mxu0 %v814
  %v976 = vpop.f32.mrb[0].mxu0
  %v977 = vadd.f32 0.0, %v976
  %v978 = vpop.f32.mrb[0].mxu0
  %v979 = vpop.f32.mrb[0].mxu0
  %v980 = vadd.f32 0.0, %v979
  %v981 = vpop.f32.mrb[0].mxu0
  %982 = vmatprep.mubr.bf16.mxu0 0
  %983 = vmatmul.mubr.bf16.gmra.mrb[0].mxu0 %v816
  %v984 = vpop.f32.mrb[0].mxu0
  %v985 = vadd.f32 0.0, %v984
  %v986 = vpop.f32.mrb[0].mxu0
  %v987 = vpop.f32.mrb[0].mxu0
  %v988 = vadd.f32 0.0, %v987
  %v989 = vpop.f32.mrb[0].mxu0
  %990 = vmatprep.mubr.bf16.mxu0 0
  %991 = vmatmul.mubr.bf16.gmra.mrb[0].mxu0 %v818
  %v992 = vpop.f32.mrb[0].mxu0
  %v993 = vadd.f32 0.0, %v992
  %v994 = vpop.f32.mrb[0].mxu0
  %v995 = vpop.f32.mrb[0].mxu0
  %v996 = vadd.f32 0.0, %v995
  %v997 = vpop.f32.mrb[0].mxu0
  %998 = vmatprep.mubr.bf16.mxu0 0
  %999 = vmatmul.mubr.bf16.gmra.mrb[0].mxu0 %v820
  %v1000 = vpop.f32.mrb[0].mxu0
  %v1001 = vadd.f32 0.0, %v1000
  %v1002 = vpop.f32.mrb[0].mxu0
  %v1003 = vpop.f32.mrb[0].mxu0
  %v1004 = vadd.f32 0.0, %v1003
  %v1005 = vpop.f32.mrb[0].mxu0
  %1006 = vmatprep.mubr.bf16.mxu0 0
  %1007 = vmatmul.mubr.bf16.gmra.mrb[0].mxu0 %v822
  %v1008 = vpop.f32.mrb[0].mxu0
  %v1009 = vadd.f32 0.0, %v1008
  %v1010 = vpop.f32.mrb[0].mxu0
  %v1011 = vpop.f32.mrb[0].mxu0
  %v1012 = vadd.f32 0.0, %v1011
  %v1013 = vpop.f32.mrb[0].mxu0
  %1014 = vmatprep.mubr.bf16.mxu0 0
  %1015 = vmatmul.mubr.bf16.gmra.mrb[0].mxu0 %v824
  %v1016 = vpop.f32.mrb[0].mxu0
  %v1017 = vadd.f32 0.0, %v1016
  %v1018 = vpop.f32.mrb[0].mxu0
  %v1019 = vpop.f32.mrb[0].mxu0
  %v1020 = vadd.f32 0.0, %v1019
  %v1021 = vpop.f32.mrb[0].mxu0
  %1022 = vmatprep.mubr.bf16.mxu0 0
  %1023 = vmatmul.mubr.bf16.gmra.mrb[0].mxu0 %v826
  %v1024 = vpop.f32.mrb[0].mxu0
  %v1025 = vadd.f32 0.0, %v1024
  %v1026 = vpop.f32.mrb[0].mxu0
  %v1027 = vpop.f32.mrb[0].mxu0
  %v1028 = vadd.f32 0.0, %v1027
  %v1029 = vpop.f32.mrb[0].mxu0
  %1030 = vmatprep.mubr.bf16.mxu0 0
  %1031 = vmatmul.mubr.bf16.gmra.mrb[0].mxu0 %v828
  %v1032 = vpop.f32.mrb[0].mxu0
  %v1033 = vadd.f32 0.0, %v1032
  %v1034 = vpop.f32.mrb[0].mxu0
  %v1035 = vpop.f32.mrb[0].mxu0
  %v1036 = vadd.f32 0.0, %v1035
  %v1037 = vpop.f32.mrb[0].mxu0
  %1038 = vmatprep.mubr.bf16.mxu0 0
  %1039 = vmatmul.mubr.bf16.gmra.mrb[0].mxu0 %v830
  %v1040 = vpop.f32.mrb[0].mxu0
  %v1041 = vadd.f32 0.0, %v1040
  %v1042 = vpop.f32.mrb[0].mxu0
  %v1043 = vpop.f32.mrb[0].mxu0
  %v1044 = vadd.f32 0.0, %v1043
  %v1045 = vpop.f32.mrb[0].mxu0
  %1046 = vmatprep.mubr.bf16.mxu0 0
  %1047 = vmatmul.mubr.bf16.gmra.mrb[0].mxu0 %v832
  %v1048 = vpop.f32.mrb[0].mxu0
  %v1049 = vadd.f32 0.0, %v1048
  %v1050 = vpop.f32.mrb[0].mxu0
  %v1051 = vpop.f32.mrb[0].mxu0
  %v1052 = vadd.f32 0.0, %v1051
  %v1053 = vpop.f32.mrb[0].mxu0
  %1054 = vmatprep.mubr.bf16.mxu0 0
  %1055 = vmatmul.mubr.bf16.gmra.mrb[0].mxu0 %v834
  %v1056 = vpop.f32.mrb[0].mxu0
  %v1057 = vadd.f32 0.0, %v1056
  %v1058 = vpop.f32.mrb[0].mxu0
  %v1059 = vpop.f32.mrb[0].mxu0
  %v1060 = vadd.f32 0.0, %v1059
  %v1061 = vpop.f32.mrb[0].mxu0
  %1062 = vmatprep.mubr.bf16.mxu0 0
  %1063 = vmatmul.mubr.bf16.gmra.mrb[0].mxu0 %v836
  %v1064 = vpop.f32.mrb[0].mxu0
  %v1065 = vadd.f32 0.0, %v1064
  %v1066 = vpop.f32.mrb[0].mxu0
  %v1067 = vpop.f32.mrb[0].mxu0
  %v1068 = vadd.f32 0.0, %v1067
  %v1069 = vpop.f32.mrb[0].mxu0
  %1070 = vmatprep.mubr.bf16.mxu0 0
  %1071 = vmatmul.mubr.bf16.gmra.mrb[0].mxu0 %v838
  %v1072 = vpop.f32.mrb[0].mxu0
  %v1073 = vadd.f32 0.0, %v1072
  %v1074 = vpop.f32.mrb[0].mxu0
  %v1075 = vpop.f32.mrb[0].mxu0
  %v1076 = vadd.f32 0.0, %v1075
  %v1077 = vpop.f32.mrb[0].mxu0
  %1078 = vmatprep.mubr.bf16.mxu0 0
  %1079 = vmatmul.mubr.bf16.gmra.mrb[0].mxu0 %v840
  %v1080 = vpop.f32.mrb[0].mxu0
  %v1081 = vadd.f32 0.0, %v1080
  %v1082 = vpop.f32.mrb[0].mxu0
  %v1083 = vpop.f32.mrb[0].mxu0
  %v1084 = vadd.f32 0.0, %v1083
  %v1085 = vpop.f32.mrb[0].mxu0
  %1086 = vmatprep.mubr.bf16.mxu0 0
  %1087 = vmatmul.mubr.bf16.gmra.mrb[0].mxu0 %v842
  %v1088 = vpop.f32.mrb[0].mxu0
  %v1089 = vadd.f32 0.0, %v1088
  %v1090 = vpop.f32.mrb[0].mxu0
  %v1091 = vpop.f32.mrb[0].mxu0
  %v1092 = vadd.f32 0.0, %v1091
  %v1093 = vpop.f32.mrb[0].mxu0
  %1094 = vmatprep.mubr.bf16.mxu0 0
  %1095 = vmatmul.mubr.bf16.gmra.mrb[0].mxu0 %v844
  %v1096 = vpop.f32.mrb[0].mxu0
  %v1097 = vadd.f32 0.0, %v1096
  %v1098 = vpop.f32.mrb[0].mxu0
  %v1099 = vpop.f32.mrb[0].mxu0
  %v1100 = vadd.f32 0.0, %v1099
  %v1101 = vpop.f32.mrb[0].mxu0
  %1102 = vmatprep.mubr.bf16.mxu0 0
  %1103 = vmatmul.mubr.bf16.gmra.mrb[0].mxu0 %v846
  %v1104 = vpop.f32.mrb[0].mxu0
  %v1105 = vadd.f32 0.0, %v1104
  %v1106 = vpop.f32.mrb[0].mxu0
  %v1107 = vpop.f32.mrb[0].mxu0
  %v1108 = vadd.f32 0.0, %v1107
  %v1109 = vpop.f32.mrb[0].mxu0
  %1110 = vmatprep.mubr.bf16.mxu0 0
  %1111 = vmatmul.mubr.bf16.gmra.mrb[0].mxu0 %v848
  %v1112 = vpop.f32.mrb[0].mxu0
  %v1113 = vadd.f32 0.0, %v1112
  %v1114 = vpop.f32.mrb[0].mxu0
  %v1115 = vpop.f32.mrb[0].mxu0
  %v1116 = vadd.f32 0.0, %v1115
  %v1117 = vpop.f32.mrb[0].mxu0
  %1118 = vmatprep.mubr.bf16.mxu0 0
  %1119 = vmatmul.mubr.bf16.gmra.mrb[0].mxu0 %v850
  %v1120 = vpop.f32.mrb[0].mxu0
  %v1121 = vadd.f32 0.0, %v1120
  %v1122 = vpop.f32.mrb[0].mxu0
  %v1123 = vpop.f32.mrb[0].mxu0
  %v1124 = vadd.f32 0.0, %v1123
  %v1125 = vpop.f32.mrb[0].mxu0
  %1126 = vmatprep.mubr.bf16.mxu0 0
  %1127 = vmatmul.mubr.bf16.gmra.mrb[0].mxu0 %v852
  %v1128 = vpop.f32.mrb[0].mxu0
  %v1129 = vadd.f32 0.0, %v1128
  %v1130 = vpop.f32.mrb[0].mxu0
  %v1131 = vpop.f32.mrb[0].mxu0
  %v1132 = vadd.f32 0.0, %v1131
  %v1133 = vpop.f32.mrb[0].mxu0
  %1134 = vmatprep.mubr.bf16.mxu0 0
  %1135 = vmatmul.mubr.bf16.gmra.mrb[0].mxu0 %v854
  %v1136 = vpop.f32.mrb[0].mxu0
  %v1137 = vadd.f32 0.0, %v1136
  %v1138 = vpop.f32.mrb[0].mxu0
  %v1139 = vpop.f32.mrb[0].mxu0
  %v1140 = vadd.f32 0.0, %v1139
  %v1141 = vpop.f32.mrb[0].mxu0
  %1142 = vmatprep.mubr.bf16.mxu0 0
  %1143 = vmatmul.mubr.bf16.gmra.mrb[0].mxu0 %v856
  %v1144 = vpop.f32.mrb[0].mxu0
  %v1145 = vadd.f32 0.0, %v1144
  %v1146 = vpop.f32.mrb[0].mxu0
  %v1147 = vpop.f32.mrb[0].mxu0
  %v1148 = vadd.f32 0.0, %v1147
  %v1149 = vpop.f32.mrb[0].mxu0
  %1150 = vdwg.mxu0
  %1152 = vset.pattern.permute.xlu0 0
  %1153 = vperm.xlu0 %1152, %v401
  %v1154 = vpop.permute.xlu0 %1153
  %1157 = vset.pattern.permute.xlu0 0
  %1158 = vperm.xlu0 %1157, %v402
  %v1159 = vpop.permute.xlu0 %1158
  %1162 = vset.pattern.permute.xlu0 0
  %1163 = vperm.xlu0 %1162, %v403
  %v1164 = vpop.permute.xlu0 %1163
  %1167 = vset.pattern.permute.xlu0 0
  %1168 = vperm.xlu0 %1167, %v404
  %v1169 = vpop.permute.xlu0 %1168
  %1172 = vset.pattern.permute.xlu0 0
  %1173 = vperm.xlu0 %1172, %v405
  %v1174 = vpop.permute.xlu0 %1173
  %1177 = vset.pattern.permute.xlu0 0
  %1178 = vperm.xlu0 %1177, %v406
  %v1179 = vpop.permute.xlu0 %1178
  %1182 = vset.pattern.permute.xlu0 0
  %1183 = vperm.xlu0 %1182, %v407
  %v1184 = vpop.permute.xlu0 %1183
  %1187 = vset.pattern.permute.xlu0 0
  %1188 = vperm.xlu0 %1187, %v408
  %v1189 = vpop.permute.xlu0 %1188
  %1192 = vset.pattern.permute.xlu0 0
  %1193 = vperm.xlu0 %1192, %v409
  %v1194 = vpop.permute.xlu0 %1193
  %1197 = vset.pattern.permute.xlu0 0
  %1198 = vperm.xlu0 %1197, %v410
  %v1199 = vpop.permute.xlu0 %1198
  %1202 = vset.pattern.permute.xlu0 0
  %1203 = vperm.xlu0 %1202, %v411
  %v1204 = vpop.permute.xlu0 %1203
  %1207 = vset.pattern.permute.xlu0 0
  %1208 = vperm.xlu0 %1207, %v412
  %v1209 = vpop.permute.xlu0 %1208
  %1212 = vset.pattern.permute.xlu0 0
  %1213 = vperm.xlu0 %1212, %v413
  %v1214 = vpop.permute.xlu0 %1213
  %1217 = vset.pattern.permute.xlu0 0
  %1218 = vperm.xlu0 %1217, %v414
  %v1219 = vpop.permute.xlu0 %1218
  %1222 = vset.pattern.permute.xlu0 0
  %1223 = vperm.xlu0 %1222, %v415
  %v1224 = vpop.permute.xlu0 %1223
  %1227 = vset.pattern.permute.xlu0 0
  %1228 = vperm.xlu0 %1227, %v416
  %v1229 = vpop.permute.xlu0 %1228
  %1232 = vset.pattern.permute.xlu0 0
  %1233 = vperm.xlu0 %1232, %v417
  %v1234 = vpop.permute.xlu0 %1233
  %1237 = vset.pattern.permute.xlu0 0
  %1238 = vperm.xlu0 %1237, %v418
  %v1239 = vpop.permute.xlu0 %1238
  %1242 = vset.pattern.permute.xlu0 0
  %1243 = vperm.xlu0 %1242, %v419
  %v1244 = vpop.permute.xlu0 %1243
  %1247 = vset.pattern.permute.xlu0 0
  %1248 = vperm.xlu0 %1247, %v420
  %v1249 = vpop.permute.xlu0 %1248
  %1252 = vset.pattern.permute.xlu0 0
  %1253 = vperm.xlu0 %1252, %v421
  %v1254 = vpop.permute.xlu0 %1253
  %1257 = vset.pattern.permute.xlu0 0
  %1258 = vperm.xlu0 %1257, %v422
  %v1259 = vpop.permute.xlu0 %1258
  %1262 = vset.pattern.permute.xlu0 0
  %1263 = vperm.xlu0 %1262, %v423
  %v1264 = vpop.permute.xlu0 %1263
  %1267 = vset.pattern.permute.xlu0 0
  %1268 = vperm.xlu0 %1267, %v424
  %v1269 = vpop.permute.xlu0 %1268
  %1272 = vset.pattern.permute.xlu0 0
  %1273 = vperm.xlu0 %1272, %v425
  %v1274 = vpop.permute.xlu0 %1273
  %1277 = vset.pattern.permute.xlu0 0
  %1278 = vperm.xlu0 %1277, %v426
  %v1279 = vpop.permute.xlu0 %1278
  %1282 = vset.pattern.permute.xlu0 0
  %1283 = vperm.xlu0 %1282, %v427
  %v1284 = vpop.permute.xlu0 %1283
  %1287 = vset.pattern.permute.xlu0 0
  %1288 = vperm.xlu0 %1287, %v428
  %v1289 = vpop.permute.xlu0 %1288
  %1292 = vset.pattern.permute.xlu0 0
  %1293 = vperm.xlu0 %1292, %v429
  %v1294 = vpop.permute.xlu0 %1293
  %1297 = vset.pattern.permute.xlu0 0
  %1298 = vperm.xlu0 %1297, %v430
  %v1299 = vpop.permute.xlu0 %1298
  %1302 = vset.pattern.permute.xlu0 0
  %1303 = vperm.xlu0 %1302, %v431
  %v1304 = vpop.permute.xlu0 %1303
  %1307 = vset.pattern.permute.xlu0 0
  %1308 = vperm.xlu0 %1307, %v432
  %v1309 = vpop.permute.xlu0 %1308
  %1312 = vset.pattern.permute.xlu0 0
  %1313 = vperm.xlu0 %1312, %v433
  %v1314 = vpop.permute.xlu0 %1313
  %1317 = vset.pattern.permute.xlu0 0
  %1318 = vperm.xlu0 %1317, %v434
  %v1319 = vpop.permute.xlu0 %1318
  %1322 = vset.pattern.permute.xlu0 0
  %1323 = vperm.xlu0 %1322, %v435
  %v1324 = vpop.permute.xlu0 %1323
  %1327 = vset.pattern.permute.xlu0 0
  %1328 = vperm.xlu0 %1327, %v436
  %v1329 = vpop.permute.xlu0 %1328
  %1332 = vset.pattern.permute.xlu0 0
  %1333 = vperm.xlu0 %1332, %v437
  %v1334 = vpop.permute.xlu0 %1333
  %1337 = vset.pattern.permute.xlu0 0
  %1338 = vperm.xlu0 %1337, %v438
  %v1339 = vpop.permute.xlu0 %1338
  %1342 = vset.pattern.permute.xlu0 0
  %1343 = vperm.xlu0 %1342, %v439
  %v1344 = vpop.permute.xlu0 %1343
  %1347 = vset.pattern.permute.xlu0 0
  %1348 = vperm.xlu0 %1347, %v440
  %v1349 = vpop.permute.xlu0 %1348
  %1352 = vset.pattern.permute.xlu0 0
  %1353 = vperm.xlu0 %1352, %v441
  %v1354 = vpop.permute.xlu0 %1353
  %1357 = vset.pattern.permute.xlu0 0
  %1358 = vperm.xlu0 %1357, %v442
  %v1359 = vpop.permute.xlu0 %1358
  %1362 = vset.pattern.permute.xlu0 0
  %1363 = vperm.xlu0 %1362, %v443
  %v1364 = vpop.permute.xlu0 %1363
  %1367 = vset.pattern.permute.xlu0 0
  %1368 = vperm.xlu0 %1367, %v444
  %v1369 = vpop.permute.xlu0 %1368
  %1372 = vset.pattern.permute.xlu0 0
  %1373 = vperm.xlu0 %1372, %v445
  %v1374 = vpop.permute.xlu0 %1373
  %1377 = vset.pattern.permute.xlu0 0
  %1378 = vperm.xlu0 %1377, %v446
  %v1379 = vpop.permute.xlu0 %1378
  %1382 = vset.pattern.permute.xlu0 0
  %1383 = vperm.xlu0 %1382, %v447
  %v1384 = vpop.permute.xlu0 %1383
  %1387 = vset.pattern.permute.xlu0 0
  %1388 = vperm.xlu0 %1387, %v448
  %v1389 = vpop.permute.xlu0 %1388
  %1392 = vset.pattern.permute.xlu0 0
  %1393 = vperm.xlu0 %1392, %v449
  %v1394 = vpop.permute.xlu0 %1393
  %1397 = vset.pattern.permute.xlu0 0
  %1398 = vperm.xlu0 %1397, %v450
  %v1399 = vpop.permute.xlu0 %1398
  %1402 = vset.pattern.permute.xlu0 0
  %1403 = vperm.xlu0 %1402, %v451
  %v1404 = vpop.permute.xlu0 %1403
  %1407 = vset.pattern.permute.xlu0 0
  %1408 = vperm.xlu0 %1407, %v452
  %v1409 = vpop.permute.xlu0 %1408
  %1412 = vset.pattern.permute.xlu0 0
  %1413 = vperm.xlu0 %1412, %v453
  %v1414 = vpop.permute.xlu0 %1413
  %1417 = vset.pattern.permute.xlu0 0
  %1418 = vperm.xlu0 %1417, %v454
  %v1419 = vpop.permute.xlu0 %1418
  %1422 = vset.pattern.permute.xlu0 0
  %1423 = vperm.xlu0 %1422, %v455
  %v1424 = vpop.permute.xlu0 %1423
  %1427 = vset.pattern.permute.xlu0 0
  %1428 = vperm.xlu0 %1427, %v456
  %v1429 = vpop.permute.xlu0 %1428
  %1432 = vset.pattern.permute.xlu0 0
  %1433 = vperm.xlu0 %1432, %v457
  %v1434 = vpop.permute.xlu0 %1433
  %1437 = vset.pattern.permute.xlu0 0
  %1438 = vperm.xlu0 %1437, %v458
  %v1439 = vpop.permute.xlu0 %1438
  %1442 = vset.pattern.permute.xlu0 0
  %1443 = vperm.xlu0 %1442, %v459
  %v1444 = vpop.permute.xlu0 %1443
  %1447 = vset.pattern.permute.xlu0 0
  %1448 = vperm.xlu0 %1447, %v460
  %v1449 = vpop.permute.xlu0 %1448
  %1452 = vset.pattern.permute.xlu0 0
  %1453 = vperm.xlu0 %1452, %v461
  %v1454 = vpop.permute.xlu0 %1453
  %1457 = vset.pattern.permute.xlu0 0
  %1458 = vperm.xlu0 %1457, %v462
  %v1459 = vpop.permute.xlu0 %1458
  %1462 = vset.pattern.permute.xlu0 0
  %1463 = vperm.xlu0 %1462, %v463
  %v1464 = vpop.permute.xlu0 %1463
  %1467 = vset.pattern.permute.xlu0 0
  %1468 = vperm.xlu0 %1467, %v464
  %v1469 = vpop.permute.xlu0 %1468
  %v1471 = vmul.f32 %v1154, %v897
  %v1472 = vmul.f32 %v1159, %v900
  %v1473 = vmul.f32 %v1164, %v905
  %v1474 = vmul.f32 %v1169, %v908
  %v1475 = vmul.f32 %v1174, %v913
  %v1476 = vmul.f32 %v1179, %v916
  %v1477 = vmul.f32 %v1184, %v921
  %v1478 = vmul.f32 %v1189, %v924
  %v1479 = vmul.f32 %v1194, %v929
  %v1480 = vmul.f32 %v1199, %v932
  %v1481 = vmul.f32 %v1204, %v937
  %v1482 = vmul.f32 %v1209, %v940
  %v1483 = vmul.f32 %v1214, %v945
  %v1484 = vmul.f32 %v1219, %v948
  %v1485 = vmul.f32 %v1224, %v953
  %v1486 = vmul.f32 %v1229, %v956
  %v1487 = vmul.f32 %v1234, %v961
  %v1488 = vmul.f32 %v1239, %v964
  %v1489 = vmul.f32 %v1244, %v969
  %v1490 = vmul.f32 %v1249, %v972
  %v1491 = vmul.f32 %v1254, %v977
  %v1492 = vmul.f32 %v1259, %v980
  %v1493 = vmul.f32 %v1264, %v985
  %v1494 = vmul.f32 %v1269, %v988
  %v1495 = vmul.f32 %v1274, %v993
  %v1496 = vmul.f32 %v1279, %v996
  %v1497 = vmul.f32 %v1284, %v1001
  %v1498 = vmul.f32 %v1289, %v1004
  %v1499 = vmul.f32 %v1294, %v1009
  %v1500 = vmul.f32 %v1299, %v1012
  %v1501 = vmul.f32 %v1304, %v1017
  %v1502 = vmul.f32 %v1309, %v1020
  %v1503 = vmul.f32 %v1314, %v1025
  %v1504 = vmul.f32 %v1319, %v1028
  %v1505 = vmul.f32 %v1324, %v1033
  %v1506 = vmul.f32 %v1329, %v1036
  %v1507 = vmul.f32 %v1334, %v1041
  %v1508 = vmul.f32 %v1339, %v1044
  %v1509 = vmul.f32 %v1344, %v1049
  %v1510 = vmul.f32 %v1349, %v1052
  %v1511 = vmul.f32 %v1354, %v1057
  %v1512 = vmul.f32 %v1359, %v1060
  %v1513 = vmul.f32 %v1364, %v1065
  %v1514 = vmul.f32 %v1369, %v1068
  %v1515 = vmul.f32 %v1374, %v1073
  %v1516 = vmul.f32 %v1379, %v1076
  %v1517 = vmul.f32 %v1384, %v1081
  %v1518 = vmul.f32 %v1389, %v1084
  %v1519 = vmul.f32 %v1394, %v1089
  %v1520 = vmul.f32 %v1399, %v1092
  %v1521 = vmul.f32 %v1404, %v1097
  %v1522 = vmul.f32 %v1409, %v1100
  %v1523 = vmul.f32 %v1414, %v1105
  %v1524 = vmul.f32 %v1419, %v1108
  %v1525 = vmul.f32 %v1424, %v1113
  %v1526 = vmul.f32 %v1429, %v1116
  %v1527 = vmul.f32 %v1434, %v1121
  %v1528 = vmul.f32 %v1439, %v1124
  %v1529 = vmul.f32 %v1444, %v1129
  %v1530 = vmul.f32 %v1449, %v1132
  %v1531 = vmul.f32 %v1454, %v1137
  %v1532 = vmul.f32 %v1459, %v1140
  %v1533 = vmul.f32 %v1464, %v1145
  %v1534 = vmul.f32 %v1469, %v1148
  %1535 = vset.pattern.permute.xlu0 1
  %1536 = vperm.xlu0 %1535, %v401
  %v1537 = vpop.permute.xlu0 %1536
  %1539 = vset.pattern.permute.xlu0 1
  %1540 = vperm.xlu0 %1539, %v402
  %v1541 = vpop.permute.xlu0 %1540
  %1543 = vset.pattern.permute.xlu0 1
  %1544 = vperm.xlu0 %1543, %v403
  %v1545 = vpop.permute.xlu0 %1544
  %1547 = vset.pattern.permute.xlu0 1
  %1548 = vperm.xlu0 %1547, %v404
  %v1549 = vpop.permute.xlu0 %1548
  %1551 = vset.pattern.permute.xlu0 1
  %1552 = vperm.xlu0 %1551, %v405
  %v1553 = vpop.permute.xlu0 %1552
  %1555 = vset.pattern.permute.xlu0 1
  %1556 = vperm.xlu0 %1555, %v406
  %v1557 = vpop.permute.xlu0 %1556
  %1559 = vset.pattern.permute.xlu0 1
  %1560 = vperm.xlu0 %1559, %v407
  %v1561 = vpop.permute.xlu0 %1560
  %1563 = vset.pattern.permute.xlu0 1
  %1564 = vperm.xlu0 %1563, %v408
  %v1565 = vpop.permute.xlu0 %1564
  %1567 = vset.pattern.permute.xlu0 1
  %1568 = vperm.xlu0 %1567, %v409
  %v1569 = vpop.permute.xlu0 %1568
  %1571 = vset.pattern.permute.xlu0 1
  %1572 = vperm.xlu0 %1571, %v410
  %v1573 = vpop.permute.xlu0 %1572
  %1575 = vset.pattern.permute.xlu0 1
  %1576 = vperm.xlu0 %1575, %v411
  %v1577 = vpop.permute.xlu0 %1576
  %1579 = vset.pattern.permute.xlu0 1
  %1580 = vperm.xlu0 %1579, %v412
  %v1581 = vpop.permute.xlu0 %1580
  %1583 = vset.pattern.permute.xlu0 1
  %1584 = vperm.xlu0 %1583, %v413
  %v1585 = vpop.permute.xlu0 %1584
  %1587 = vset.pattern.permute.xlu0 1
  %1588 = vperm.xlu0 %1587, %v414
  %v1589 = vpop.permute.xlu0 %1588
  %1591 = vset.pattern.permute.xlu0 1
  %1592 = vperm.xlu0 %1591, %v415
  %v1593 = vpop.permute.xlu0 %1592
  %1595 = vset.pattern.permute.xlu0 1
  %1596 = vperm.xlu0 %1595, %v416
  %v1597 = vpop.permute.xlu0 %1596
  %1599 = vset.pattern.permute.xlu0 1
  %1600 = vperm.xlu0 %1599, %v417
  %v1601 = vpop.permute.xlu0 %1600
  %1603 = vset.pattern.permute.xlu0 1
  %1604 = vperm.xlu0 %1603, %v418
  %v1605 = vpop.permute.xlu0 %1604
  %1607 = vset.pattern.permute.xlu0 1
  %1608 = vperm.xlu0 %1607, %v419
  %v1609 = vpop.permute.xlu0 %1608
  %1611 = vset.pattern.permute.xlu0 1
  %1612 = vperm.xlu0 %1611, %v420
  %v1613 = vpop.permute.xlu0 %1612
  %1615 = vset.pattern.permute.xlu0 1
  %1616 = vperm.xlu0 %1615, %v421
  %v1617 = vpop.permute.xlu0 %1616
  %1619 = vset.pattern.permute.xlu0 1
  %1620 = vperm.xlu0 %1619, %v422
  %v1621 = vpop.permute.xlu0 %1620
  %1623 = vset.pattern.permute.xlu0 1
  %1624 = vperm.xlu0 %1623, %v423
  %v1625 = vpop.permute.xlu0 %1624
  %1627 = vset.pattern.permute.xlu0 1
  %1628 = vperm.xlu0 %1627, %v424
  %v1629 = vpop.permute.xlu0 %1628
  %1631 = vset.pattern.permute.xlu0 1
  %1632 = vperm.xlu0 %1631, %v425
  %v1633 = vpop.permute.xlu0 %1632
  %1635 = vset.pattern.permute.xlu0 1
  %1636 = vperm.xlu0 %1635, %v426
  %v1637 = vpop.permute.xlu0 %1636
  %1639 = vset.pattern.permute.xlu0 1
  %1640 = vperm.xlu0 %1639, %v427
  %v1641 = vpop.permute.xlu0 %1640
  %1643 = vset.pattern.permute.xlu0 1
  %1644 = vperm.xlu0 %1643, %v428
  %v1645 = vpop.permute.xlu0 %1644
  %1647 = vset.pattern.permute.xlu0 1
  %1648 = vperm.xlu0 %1647, %v429
  %v1649 = vpop.permute.xlu0 %1648
  %1651 = vset.pattern.permute.xlu0 1
  %1652 = vperm.xlu0 %1651, %v430
  %v1653 = vpop.permute.xlu0 %1652
  %1655 = vset.pattern.permute.xlu0 1
  %1656 = vperm.xlu0 %1655, %v431
  %v1657 = vpop.permute.xlu0 %1656
  %1659 = vset.pattern.permute.xlu0 1
  %1660 = vperm.xlu0 %1659, %v432
  %v1661 = vpop.permute.xlu0 %1660
  %1663 = vset.pattern.permute.xlu0 1
  %1664 = vperm.xlu0 %1663, %v433
  %v1665 = vpop.permute.xlu0 %1664
  %1667 = vset.pattern.permute.xlu0 1
  %1668 = vperm.xlu0 %1667, %v434
  %v1669 = vpop.permute.xlu0 %1668
  %1671 = vset.pattern.permute.xlu0 1
  %1672 = vperm.xlu0 %1671, %v435
  %v1673 = vpop.permute.xlu0 %1672
  %1675 = vset.pattern.permute.xlu0 1
  %1676 = vperm.xlu0 %1675, %v436
  %v1677 = vpop.permute.xlu0 %1676
  %1679 = vset.pattern.permute.xlu0 1
  %1680 = vperm.xlu0 %1679, %v437
  %v1681 = vpop.permute.xlu0 %1680
  %1683 = vset.pattern.permute.xlu0 1
  %1684 = vperm.xlu0 %1683, %v438
  %v1685 = vpop.permute.xlu0 %1684
  %1687 = vset.pattern.permute.xlu0 1
  %1688 = vperm.xlu0 %1687, %v439
  %v1689 = vpop.permute.xlu0 %1688
  %1691 = vset.pattern.permute.xlu0 1
  %1692 = vperm.xlu0 %1691, %v440
  %v1693 = vpop.permute.xlu0 %1692
  %1695 = vset.pattern.permute.xlu0 1
  %1696 = vperm.xlu0 %1695, %v441
  %v1697 = vpop.permute.xlu0 %1696
  %1699 = vset.pattern.permute.xlu0 1
  %1700 = vperm.xlu0 %1699, %v442
  %v1701 = vpop.permute.xlu0 %1700
  %1703 = vset.pattern.permute.xlu0 1
  %1704 = vperm.xlu0 %1703, %v443
  %v1705 = vpop.permute.xlu0 %1704
  %1707 = vset.pattern.permute.xlu0 1
  %1708 = vperm.xlu0 %1707, %v444
  %v1709 = vpop.permute.xlu0 %1708
  %1711 = vset.pattern.permute.xlu0 1
  %1712 = vperm.xlu0 %1711, %v445
  %v1713 = vpop.permute.xlu0 %1712
  %1715 = vset.pattern.permute.xlu0 1
  %1716 = vperm.xlu0 %1715, %v446
  %v1717 = vpop.permute.xlu0 %1716
  %1719 = vset.pattern.permute.xlu0 1
  %1720 = vperm.xlu0 %1719, %v447
  %v1721 = vpop.permute.xlu0 %1720
  %1723 = vset.pattern.permute.xlu0 1
  %1724 = vperm.xlu0 %1723, %v448
  %v1725 = vpop.permute.xlu0 %1724
  %1727 = vset.pattern.permute.xlu0 1
  %1728 = vperm.xlu0 %1727, %v449
  %v1729 = vpop.permute.xlu0 %1728
  %1731 = vset.pattern.permute.xlu0 1
  %1732 = vperm.xlu0 %1731, %v450
  %v1733 = vpop.permute.xlu0 %1732
  %1735 = vset.pattern.permute.xlu0 1
  %1736 = vperm.xlu0 %1735, %v451
  %v1737 = vpop.permute.xlu0 %1736
  %1739 = vset.pattern.permute.xlu0 1
  %1740 = vperm.xlu0 %1739, %v452
  %v1741 = vpop.permute.xlu0 %1740
  %1743 = vset.pattern.permute.xlu0 1
  %1744 = vperm.xlu0 %1743, %v453
  %v1745 = vpop.permute.xlu0 %1744
  %1747 = vset.pattern.permute.xlu0 1
  %1748 = vperm.xlu0 %1747, %v454
  %v1749 = vpop.permute.xlu0 %1748
  %1751 = vset.pattern.permute.xlu0 1
  %1752 = vperm.xlu0 %1751, %v455
  %v1753 = vpop.permute.xlu0 %1752
  %1755 = vset.pattern.permute.xlu0 1
  %1756 = vperm.xlu0 %1755, %v456
  %v1757 = vpop.permute.xlu0 %1756
  %1759 = vset.pattern.permute.xlu0 1
  %1760 = vperm.xlu0 %1759, %v457
  %v1761 = vpop.permute.xlu0 %1760
  %1763 = vset.pattern.permute.xlu0 1
  %1764 = vperm.xlu0 %1763, %v458
  %v1765 = vpop.permute.xlu0 %1764
  %1767 = vset.pattern.permute.xlu0 1
  %1768 = vperm.xlu0 %1767, %v459
  %v1769 = vpop.permute.xlu0 %1768
  %1771 = vset.pattern.permute.xlu0 1
  %1772 = vperm.xlu0 %1771, %v460
  %v1773 = vpop.permute.xlu0 %1772
  %1775 = vset.pattern.permute.xlu0 1
  %1776 = vperm.xlu0 %1775, %v461
  %v1777 = vpop.permute.xlu0 %1776
  %1779 = vset.pattern.permute.xlu0 1
  %1780 = vperm.xlu0 %1779, %v462
  %v1781 = vpop.permute.xlu0 %1780
  %1783 = vset.pattern.permute.xlu0 1
  %1784 = vperm.xlu0 %1783, %v463
  %v1785 = vpop.permute.xlu0 %1784
  %1787 = vset.pattern.permute.xlu0 1
  %1788 = vperm.xlu0 %1787, %v464
  %v1789 = vpop.permute.xlu0 %1788
  %v1791 = vmul.f32 %v1537, %v897
  %v1792 = vmul.f32 %v1541, %v900
  %v1793 = vmul.f32 %v1545, %v905
  %v1794 = vmul.f32 %v1549, %v908
  %v1795 = vmul.f32 %v1553, %v913
  %v1796 = vmul.f32 %v1557, %v916
  %v1797 = vmul.f32 %v1561, %v921
  %v1798 = vmul.f32 %v1565, %v924
  %v1799 = vmul.f32 %v1569, %v929
  %v1800 = vmul.f32 %v1573, %v932
  %v1801 = vmul.f32 %v1577, %v937
  %v1802 = vmul.f32 %v1581, %v940
  %v1803 = vmul.f32 %v1585, %v945
  %v1804 = vmul.f32 %v1589, %v948
  %v1805 = vmul.f32 %v1593, %v953
  %v1806 = vmul.f32 %v1597, %v956
  %v1807 = vmul.f32 %v1601, %v961
  %v1808 = vmul.f32 %v1605, %v964
  %v1809 = vmul.f32 %v1609, %v969
  %v1810 = vmul.f32 %v1613, %v972
  %v1811 = vmul.f32 %v1617, %v977
  %v1812 = vmul.f32 %v1621, %v980
  %v1813 = vmul.f32 %v1625, %v985
  %v1814 = vmul.f32 %v1629, %v988
  %v1815 = vmul.f32 %v1633, %v993
  %v1816 = vmul.f32 %v1637, %v996
  %v1817 = vmul.f32 %v1641, %v1001
  %v1818 = vmul.f32 %v1645, %v1004
  %v1819 = vmul.f32 %v1649, %v1009
  %v1820 = vmul.f32 %v1653, %v1012
  %v1821 = vmul.f32 %v1657, %v1017
  %v1822 = vmul.f32 %v1661, %v1020
  %v1823 = vmul.f32 %v1665, %v1025
  %v1824 = vmul.f32 %v1669, %v1028
  %v1825 = vmul.f32 %v1673, %v1033
  %v1826 = vmul.f32 %v1677, %v1036
  %v1827 = vmul.f32 %v1681, %v1041
  %v1828 = vmul.f32 %v1685, %v1044
  %v1829 = vmul.f32 %v1689, %v1049
  %v1830 = vmul.f32 %v1693, %v1052
  %v1831 = vmul.f32 %v1697, %v1057
  %v1832 = vmul.f32 %v1701, %v1060
  %v1833 = vmul.f32 %v1705, %v1065
  %v1834 = vmul.f32 %v1709, %v1068
  %v1835 = vmul.f32 %v1713, %v1073
  %v1836 = vmul.f32 %v1717, %v1076
  %v1837 = vmul.f32 %v1721, %v1081
  %v1838 = vmul.f32 %v1725, %v1084
  %v1839 = vmul.f32 %v1729, %v1089
  %v1840 = vmul.f32 %v1733, %v1092
  %v1841 = vmul.f32 %v1737, %v1097
  %v1842 = vmul.f32 %v1741, %v1100
  %v1843 = vmul.f32 %v1745, %v1105
  %v1844 = vmul.f32 %v1749, %v1108
  %v1845 = vmul.f32 %v1753, %v1113
  %v1846 = vmul.f32 %v1757, %v1116
  %v1847 = vmul.f32 %v1761, %v1121
  %v1848 = vmul.f32 %v1765, %v1124
  %v1849 = vmul.f32 %v1769, %v1129
  %v1850 = vmul.f32 %v1773, %v1132
  %v1851 = vmul.f32 %v1777, %v1137
  %v1852 = vmul.f32 %v1781, %v1140
  %v1853 = vmul.f32 %v1785, %v1145
  %v1854 = vmul.f32 %v1789, %v1148
  %1919 = vrot.lane.b32.xlu0 %v1791, 96
  %v1920 = vpop.permute.xlu0 %1919
  %1921 = vrot.lane.b32.xlu0 %v1792, 96
  %v1922 = vpop.permute.xlu0 %1921
  %1923 = vrot.lane.b32.xlu0 %v1793, 96
  %v1924 = vpop.permute.xlu0 %1923
  %1925 = vrot.lane.b32.xlu0 %v1794, 96
  %v1926 = vpop.permute.xlu0 %1925
  %1927 = vrot.lane.b32.xlu0 %v1795, 96
  %v1928 = vpop.permute.xlu0 %1927
  %1929 = vrot.lane.b32.xlu0 %v1796, 96
  %v1930 = vpop.permute.xlu0 %1929
  %1931 = vrot.lane.b32.xlu0 %v1797, 96
  %v1932 = vpop.permute.xlu0 %1931
  %1933 = vrot.lane.b32.xlu0 %v1798, 96
  %v1934 = vpop.permute.xlu0 %1933
  %1935 = vrot.lane.b32.xlu0 %v1799, 96
  %v1936 = vpop.permute.xlu0 %1935
  %1937 = vrot.lane.b32.xlu0 %v1800, 96
  %v1938 = vpop.permute.xlu0 %1937
  %1939 = vrot.lane.b32.xlu0 %v1801, 96
  %v1940 = vpop.permute.xlu0 %1939
  %1941 = vrot.lane.b32.xlu0 %v1802, 96
  %v1942 = vpop.permute.xlu0 %1941
  %1943 = vrot.lane.b32.xlu0 %v1803, 96
  %v1944 = vpop.permute.xlu0 %1943
  %1945 = vrot.lane.b32.xlu0 %v1804, 96
  %v1946 = vpop.permute.xlu0 %1945
  %1947 = vrot.lane.b32.xlu0 %v1805, 96
  %v1948 = vpop.permute.xlu0 %1947
  %1949 = vrot.lane.b32.xlu0 %v1806, 96
  %v1950 = vpop.permute.xlu0 %1949
  %1951 = vrot.lane.b32.xlu0 %v1807, 96
  %v1952 = vpop.permute.xlu0 %1951
  %1953 = vrot.lane.b32.xlu0 %v1808, 96
  %v1954 = vpop.permute.xlu0 %1953
  %1955 = vrot.lane.b32.xlu0 %v1809, 96
  %v1956 = vpop.permute.xlu0 %1955
  %1957 = vrot.lane.b32.xlu0 %v1810, 96
  %v1958 = vpop.permute.xlu0 %1957
  %1959 = vrot.lane.b32.xlu0 %v1811, 96
  %v1960 = vpop.permute.xlu0 %1959
  %1961 = vrot.lane.b32.xlu0 %v1812, 96
  %v1962 = vpop.permute.xlu0 %1961
  %1963 = vrot.lane.b32.xlu0 %v1813, 96
  %v1964 = vpop.permute.xlu0 %1963
  %1965 = vrot.lane.b32.xlu0 %v1814, 96
  %v1966 = vpop.permute.xlu0 %1965
  %1967 = vrot.lane.b32.xlu0 %v1815, 96
  %v1968 = vpop.permute.xlu0 %1967
  %1969 = vrot.lane.b32.xlu0 %v1816, 96
  %v1970 = vpop.permute.xlu0 %1969
  %1971 = vrot.lane.b32.xlu0 %v1817, 96
  %v1972 = vpop.permute.xlu0 %1971
  %1973 = vrot.lane.b32.xlu0 %v1818, 96
  %v1974 = vpop.permute.xlu0 %1973
  %1975 = vrot.lane.b32.xlu0 %v1819, 96
  %v1976 = vpop.permute.xlu0 %1975
  %1977 = vrot.lane.b32.xlu0 %v1820, 96
  %v1978 = vpop.permute.xlu0 %1977
  %1979 = vrot.lane.b32.xlu0 %v1821, 96
  %v1980 = vpop.permute.xlu0 %1979
  %1981 = vrot.lane.b32.xlu0 %v1822, 96
  %v1982 = vpop.permute.xlu0 %1981
  %1983 = vrot.lane.b32.xlu0 %v1823, 96
  %v1984 = vpop.permute.xlu0 %1983
  %1985 = vrot.lane.b32.xlu0 %v1824, 96
  %v1986 = vpop.permute.xlu0 %1985
  %1987 = vrot.lane.b32.xlu0 %v1825, 96
  %v1988 = vpop.permute.xlu0 %1987
  %1989 = vrot.lane.b32.xlu0 %v1826, 96
  %v1990 = vpop.permute.xlu0 %1989
  %1991 = vrot.lane.b32.xlu0 %v1827, 96
  %v1992 = vpop.permute.xlu0 %1991
  %1993 = vrot.lane.b32.xlu0 %v1828, 96
  %v1994 = vpop.permute.xlu0 %1993
  %1995 = vrot.lane.b32.xlu0 %v1829, 96
  %v1996 = vpop.permute.xlu0 %1995
  %1997 = vrot.lane.b32.xlu0 %v1830, 96
  %v1998 = vpop.permute.xlu0 %1997
  %1999 = vrot.lane.b32.xlu0 %v1831, 96
  %v2000 = vpop.permute.xlu0 %1999
  %2001 = vrot.lane.b32.xlu0 %v1832, 96
  %v2002 = vpop.permute.xlu0 %2001
  %2003 = vrot.lane.b32.xlu0 %v1833, 96
  %v2004 = vpop.permute.xlu0 %2003
  %2005 = vrot.lane.b32.xlu0 %v1834, 96
  %v2006 = vpop.permute.xlu0 %2005
  %2007 = vrot.lane.b32.xlu0 %v1835, 96
  %v2008 = vpop.permute.xlu0 %2007
  %2009 = vrot.lane.b32.xlu0 %v1836, 96
  %v2010 = vpop.permute.xlu0 %2009
  %2011 = vrot.lane.b32.xlu0 %v1837, 96
  %v2012 = vpop.permute.xlu0 %2011
  %2013 = vrot.lane.b32.xlu0 %v1838, 96
  %v2014 = vpop.permute.xlu0 %2013
  %2015 = vrot.lane.b32.xlu0 %v1839, 96
  %v2016 = vpop.permute.xlu0 %2015
  %2017 = vrot.lane.b32.xlu0 %v1840, 96
  %v2018 = vpop.permute.xlu0 %2017
  %2019 = vrot.lane.b32.xlu0 %v1841, 96
  %v2020 = vpop.permute.xlu0 %2019
  %2021 = vrot.lane.b32.xlu0 %v1842, 96
  %v2022 = vpop.permute.xlu0 %2021
  %2023 = vrot.lane.b32.xlu0 %v1843, 96
  %v2024 = vpop.permute.xlu0 %2023
  %2025 = vrot.lane.b32.xlu0 %v1844, 96
  %v2026 = vpop.permute.xlu0 %2025
  %2027 = vrot.lane.b32.xlu0 %v1845, 96
  %v2028 = vpop.permute.xlu0 %2027
  %2029 = vrot.lane.b32.xlu0 %v1846, 96
  %v2030 = vpop.permute.xlu0 %2029
  %2031 = vrot.lane.b32.xlu0 %v1847, 96
  %v2032 = vpop.permute.xlu0 %2031
  %2033 = vrot.lane.b32.xlu0 %v1848, 96
  %v2034 = vpop.permute.xlu0 %2033
  %2035 = vrot.lane.b32.xlu0 %v1849, 96
  %v2036 = vpop.permute.xlu0 %2035
  %2037 = vrot.lane.b32.xlu0 %v1850, 96
  %v2038 = vpop.permute.xlu0 %2037
  %2039 = vrot.lane.b32.xlu0 %v1851, 96
  %v2040 = vpop.permute.xlu0 %2039
  %2041 = vrot.lane.b32.xlu0 %v1852, 96
  %v2042 = vpop.permute.xlu0 %2041
  %2043 = vrot.lane.b32.xlu0 %v1853, 96
  %v2044 = vpop.permute.xlu0 %2043
  %2045 = vrot.lane.b32.xlu0 %v1854, 96
  %v2046 = vpop.permute.xlu0 %2045
  %v2111 = vadd.f32 %v1471, %v1920
  %v2112 = vadd.f32 %v1472, %v1922
  %v2113 = vadd.f32 %v1473, %v1924
  %v2114 = vadd.f32 %v1474, %v1926
  %v2115 = vadd.f32 %v1475, %v1928
  %v2116 = vadd.f32 %v1476, %v1930
  %v2117 = vadd.f32 %v1477, %v1932
  %v2118 = vadd.f32 %v1478, %v1934
  %v2119 = vadd.f32 %v1479, %v1936
  %v2120 = vadd.f32 %v1480, %v1938
  %v2121 = vadd.f32 %v1481, %v1940
  %v2122 = vadd.f32 %v1482, %v1942
  %v2123 = vadd.f32 %v1483, %v1944
  %v2124 = vadd.f32 %v1484, %v1946
  %v2125 = vadd.f32 %v1485, %v1948
  %v2126 = vadd.f32 %v1486, %v1950
  %v2127 = vadd.f32 %v1487, %v1952
  %v2128 = vadd.f32 %v1488, %v1954
  %v2129 = vadd.f32 %v1489, %v1956
  %v2130 = vadd.f32 %v1490, %v1958
  %v2131 = vadd.f32 %v1491, %v1960
  %v2132 = vadd.f32 %v1492, %v1962
  %v2133 = vadd.f32 %v1493, %v1964
  %v2134 = vadd.f32 %v1494, %v1966
  %v2135 = vadd.f32 %v1495, %v1968
  %v2136 = vadd.f32 %v1496, %v1970
  %v2137 = vadd.f32 %v1497, %v1972
  %v2138 = vadd.f32 %v1498, %v1974
  %v2139 = vadd.f32 %v1499, %v1976
  %v2140 = vadd.f32 %v1500, %v1978
  %v2141 = vadd.f32 %v1501, %v1980
  %v2142 = vadd.f32 %v1502, %v1982
  %v2143 = vadd.f32 %v1503, %v1984
  %v2144 = vadd.f32 %v1504, %v1986
  %v2145 = vadd.f32 %v1505, %v1988
  %v2146 = vadd.f32 %v1506, %v1990
  %v2147 = vadd.f32 %v1507, %v1992
  %v2148 = vadd.f32 %v1508, %v1994
  %v2149 = vadd.f32 %v1509, %v1996
  %v2150 = vadd.f32 %v1510, %v1998
  %v2151 = vadd.f32 %v1511, %v2000
  %v2152 = vadd.f32 %v1512, %v2002
  %v2153 = vadd.f32 %v1513, %v2004
  %v2154 = vadd.f32 %v1514, %v2006
  %v2155 = vadd.f32 %v1515, %v2008
  %v2156 = vadd.f32 %v1516, %v2010
  %v2157 = vadd.f32 %v1517, %v2012
  %v2158 = vadd.f32 %v1518, %v2014
  %v2159 = vadd.f32 %v1519, %v2016
  %v2160 = vadd.f32 %v1520, %v2018
  %v2161 = vadd.f32 %v1521, %v2020
  %v2162 = vadd.f32 %v1522, %v2022
  %v2163 = vadd.f32 %v1523, %v2024
  %v2164 = vadd.f32 %v1524, %v2026
  %v2165 = vadd.f32 %v1525, %v2028
  %v2166 = vadd.f32 %v1526, %v2030
  %v2167 = vadd.f32 %v1527, %v2032
  %v2168 = vadd.f32 %v1528, %v2034
  %v2169 = vadd.f32 %v1529, %v2036
  %v2170 = vadd.f32 %v1530, %v2038
  %v2171 = vadd.f32 %v1531, %v2040
  %v2172 = vadd.f32 %v1532, %v2042
  %v2173 = vadd.f32 %v1533, %v2044
  %v2174 = vadd.f32 %v1534, %v2046
  %v2175 = vtanh.pop %v2111
  %v2176 = vtanh.pop %v2112
  %v2177 = vtanh.pop %v2113
  %v2178 = vtanh.pop %v2114
  %v2179 = vtanh.pop %v2115
  %v2180 = vtanh.pop %v2116
  %v2181 = vtanh.pop %v2117
  %v2182 = vtanh.pop %v2118
  %v2183 = vtanh.pop %v2119
  %v2184 = vtanh.pop %v2120
  %v2185 = vtanh.pop %v2121
  %v2186 = vtanh.pop %v2122
  %v2187 = vtanh.pop %v2123
  %v2188 = vtanh.pop %v2124
  %v2189 = vtanh.pop %v2125
  %v2190 = vtanh.pop %v2126
  %v2191 = vtanh.pop %v2127
  %v2192 = vtanh.pop %v2128
  %v2193 = vtanh.pop %v2129
  %v2194 = vtanh.pop %v2130
  %v2195 = vtanh.pop %v2131
  %v2196 = vtanh.pop %v2132
  %v2197 = vtanh.pop %v2133
  %v2198 = vtanh.pop %v2134
  %v2199 = vtanh.pop %v2135
  %v2200 = vtanh.pop %v2136
  %v2201 = vtanh.pop %v2137
  %v2202 = vtanh.pop %v2138
  %v2203 = vtanh.pop %v2139
  %v2204 = vtanh.pop %v2140
  %v2205 = vtanh.pop %v2141
  %v2206 = vtanh.pop %v2142
  %v2207 = vtanh.pop %v2143
  %v2208 = vtanh.pop %v2144
  %v2209 = vtanh.pop %v2145
  %v2210 = vtanh.pop %v2146
  %v2211 = vtanh.pop %v2147
  %v2212 = vtanh.pop %v2148
  %v2213 = vtanh.pop %v2149
  %v2214 = vtanh.pop %v2150
  %v2215 = vtanh.pop %v2151
  %v2216 = vtanh.pop %v2152
  %v2217 = vtanh.pop %v2153
  %v2218 = vtanh.pop %v2154
  %v2219 = vtanh.pop %v2155
  %v2220 = vtanh.pop %v2156
  %v2221 = vtanh.pop %v2157
  %v2222 = vtanh.pop %v2158
  %v2223 = vtanh.pop %v2159
  %v2224 = vtanh.pop %v2160
  %v2225 = vtanh.pop %v2161
  %v2226 = vtanh.pop %v2162
  %v2227 = vtanh.pop %v2163
  %v2228 = vtanh.pop %v2164
  %v2229 = vtanh.pop %v2165
  %v2230 = vtanh.pop %v2166
  %v2231 = vtanh.pop %v2167
  %v2232 = vtanh.pop %v2168
  %v2233 = vtanh.pop %v2169
  %v2234 = vtanh.pop %v2170
  %v2235 = vtanh.pop %v2171
  %v2236 = vtanh.pop %v2172
  %v2237 = vtanh.pop %v2173
  %v2238 = vtanh.pop %v2174
  %vm2239 = vcmask 261120
  %2240 = vst.msk [vmem:[%s3] sm:$0xff] %vm2239, %v2175
  %2241 = vst.msk [vmem:[%s3 + $0x8] sm:$0xff] %vm2239, %v2176
  %2242 = vst.msk [vmem:[%s3 + $0x10] sm:$0xff] %vm2239, %v2177
  %2243 = vst.msk [vmem:[%s3 + $0x18] sm:$0xff] %vm2239, %v2178
  %2244 = vst.msk [vmem:[%s3 + $0x20] sm:$0xff] %vm2239, %v2179
  %2245 = vst.msk [vmem:[%s3 + $0x28] sm:$0xff] %vm2239, %v2180
  %2246 = vst.msk [vmem:[%s3 + $0x30] sm:$0xff] %vm2239, %v2181
  %2247 = vst.msk [vmem:[%s3 + $0x38] sm:$0xff] %vm2239, %v2182
  %2248 = vst.msk [vmem:[%s3 + $0x40] sm:$0xff] %vm2239, %v2183
  %2249 = vst.msk [vmem:[%s3 + $0x48] sm:$0xff] %vm2239, %v2184
  %2250 = vst.msk [vmem:[%s3 + $0x50] sm:$0xff] %vm2239, %v2185
  %2251 = vst.msk [vmem:[%s3 + $0x58] sm:$0xff] %vm2239, %v2186
  %2252 = vst.msk [vmem:[%s3 + $0x60] sm:$0xff] %vm2239, %v2187
  %2253 = vst.msk [vmem:[%s3 + $0x68] sm:$0xff] %vm2239, %v2188
  %2254 = vst.msk [vmem:[%s3 + $0x70] sm:$0xff] %vm2239, %v2189
  %2255 = vst.msk [vmem:[%s3 + $0x78] sm:$0xff] %vm2239, %v2190
  %2256 = vst.msk [vmem:[%s3 + $0x80] sm:$0xff] %vm2239, %v2191
  %2257 = vst.msk [vmem:[%s3 + $0x88] sm:$0xff] %vm2239, %v2192
  %2258 = vst.msk [vmem:[%s3 + $0x90] sm:$0xff] %vm2239, %v2193
  %2259 = vst.msk [vmem:[%s3 + $0x98] sm:$0xff] %vm2239, %v2194
  %2260 = vst.msk [vmem:[%s3 + $0xa0] sm:$0xff] %vm2239, %v2195
  %2261 = vst.msk [vmem:[%s3 + $0xa8] sm:$0xff] %vm2239, %v2196
  %2262 = vst.msk [vmem:[%s3 + $0xb0] sm:$0xff] %vm2239, %v2197
  %2263 = vst.msk [vmem:[%s3 + $0xb8] sm:$0xff] %vm2239, %v2198
  %2264 = vst.msk [vmem:[%s3 + $0xc0] sm:$0xff] %vm2239, %v2199
  %2265 = vst.msk [vmem:[%s3 + $0xc8] sm:$0xff] %vm2239, %v2200
  %2266 = vst.msk [vmem:[%s3 + $0xd0] sm:$0xff] %vm2239, %v2201
  %2267 = vst.msk [vmem:[%s3 + $0xd8] sm:$0xff] %vm2239, %v2202
  %2268 = vst.msk [vmem:[%s3 + $0xe0] sm:$0xff] %vm2239, %v2203
  %2269 = vst.msk [vmem:[%s3 + $0xe8] sm:$0xff] %vm2239, %v2204
  %2270 = vst.msk [vmem:[%s3 + $0xf0] sm:$0xff] %vm2239, %v2205
  %2271 = vst.msk [vmem:[%s3 + $0xf8] sm:$0xff] %vm2239, %v2206
  %2272 = vst.msk [vmem:[%s3 + $0x100] sm:$0xff] %vm2239, %v2207
  %2273 = vst.msk [vmem:[%s3 + $0x108] sm:$0xff] %vm2239, %v2208
  %2274 = vst.msk [vmem:[%s3 + $0x110] sm:$0xff] %vm2239, %v2209
  %2275 = vst.msk [vmem:[%s3 + $0x118] sm:$0xff] %vm2239, %v2210
  %2276 = vst.msk [vmem:[%s3 + $0x120] sm:$0xff] %vm2239, %v2211
  %2277 = vst.msk [vmem:[%s3 + $0x128] sm:$0xff] %vm2239, %v2212
  %2278 = vst.msk [vmem:[%s3 + $0x130] sm:$0xff] %vm2239, %v2213
  %2279 = vst.msk [vmem:[%s3 + $0x138] sm:$0xff] %vm2239, %v2214
  %2280 = vst.msk [vmem:[%s3 + $0x140] sm:$0xff] %vm2239, %v2215
  %2281 = vst.msk [vmem:[%s3 + $0x148] sm:$0xff] %vm2239, %v2216
  %2282 = vst.msk [vmem:[%s3 + $0x150] sm:$0xff] %vm2239, %v2217
  %2283 = vst.msk [vmem:[%s3 + $0x158] sm:$0xff] %vm2239, %v2218
  %2284 = vst.msk [vmem:[%s3 + $0x160] sm:$0xff] %vm2239, %v2219
  %2285 = vst.msk [vmem:[%s3 + $0x168] sm:$0xff] %vm2239, %v2220
  %2286 = vst.msk [vmem:[%s3 + $0x170] sm:$0xff] %vm2239, %v2221
  %2287 = vst.msk [vmem:[%s3 + $0x178] sm:$0xff] %vm2239, %v2222
  %2288 = vst.msk [vmem:[%s3 + $0x180] sm:$0xff] %vm2239, %v2223
  %2289 = vst.msk [vmem:[%s3 + $0x188] sm:$0xff] %vm2239, %v2224
  %2290 = vst.msk [vmem:[%s3 + $0x190] sm:$0xff] %vm2239, %v2225
  %2291 = vst.msk [vmem:[%s3 + $0x198] sm:$0xff] %vm2239, %v2226
  %2292 = vst.msk [vmem:[%s3 + $0x1a0] sm:$0xff] %vm2239, %v2227
  %2293 = vst.msk [vmem:[%s3 + $0x1a8] sm:$0xff] %vm2239, %v2228
  %2294 = vst.msk [vmem:[%s3 + $0x1b0] sm:$0xff] %vm2239, %v2229
  %2295 = vst.msk [vmem:[%s3 + $0x1b8] sm:$0xff] %vm2239, %v2230
  %2296 = vst.msk [vmem:[%s3 + $0x1c0] sm:$0xff] %vm2239, %v2231
  %2297 = vst.msk [vmem:[%s3 + $0x1c8] sm:$0xff] %vm2239, %v2232
  %2298 = vst.msk [vmem:[%s3 + $0x1d0] sm:$0xff] %vm2239, %v2233
  %2299 = vst.msk [vmem:[%s3 + $0x1d8] sm:$0xff] %vm2239, %v2234
  %2300 = vst.msk [vmem:[%s3 + $0x1e0] sm:$0xff] %vm2239, %v2235
  %2301 = vst.msk [vmem:[%s3 + $0x1e8] sm:$0xff] %vm2239, %v2236
  %2302 = vst.msk [vmem:[%s3 + $0x1f0] sm:$0xff] %vm2239, %v2237
  %2303 = vst.msk [vmem:[%s3 + $0x1f8] sm:$0xff] %vm2239, %v2238
  // Predicated region
  $region14: #{tpu_custom_call.1} parent=0 // pred_check
    _
  $region15: #{tpu_custom_call.1} parent=0 // pred_check_branch
    %2305 = sbr.rel (0) target = $region17
  $region16: #{tpu_custom_call.1} parent=0 // pred_region
    _
  $region17: #{tpu_custom_call.1} parent=0 // pred_fallthru
    _
  // Predicated region
  $region18: #{tpu_custom_call.1} parent=0 // pred_check
    _
  $region19: #{tpu_custom_call.1} parent=0 // pred_check_branch
    %2307 = sbr.rel (0) target = $region21
  $region20: #{tpu_custom_call.1} parent=0 // pred_region
    _
  $region21: #{tpu_custom_call.1} parent=0 // pred_fallthru
    _

</llo_original>
